<compile_context>
chip_gen: v6e
topology: v6e:2x2x1
jax: 0.10.0
libtpu: 0.0.40
codegen_flags: <defaults>
</compile_context>

<pallas_src>
import functools

import numpy as np
import jax
import jax.numpy as jnp
from jax import lax
from jax.experimental import pallas as pl
from jax.experimental.pallas import tpu as pltpu


def _round_up(v, m):
    return ((v + m - 1) // m) * m


def _head_kernel(x_ref, casc_ref, mask_ref, w1_ref, b1_ref, w2_ref, b2_ref,
                 w3_ref, b3_ref, alpha_ref, smat_ref, amat_ref, wp3_ref,
                 wc_ref, fcb_ref, out_ref, *, H, W, TB, pool_size):
    f32 = jnp.float32
    bf16 = jnp.bfloat16
    HW = H * W
    N = TB * HW                              # flattened (image, h, w) lane axis
    P = pool_size
    wh, ww = H // P, W // P
    cmid = wp3_ref.shape[0]                  # real (unpadded) conv channel count

    # Tap order matches the host-side weight fusion: o = dy*3 + dx, offset (dy-1, dx-1).
    offsets = [(dy - 1, dx - 1) for dy in range(3) for dx in range(3)]
    masks = mask_ref[...]                    # (9, N) 0/1 f32, host-built constant

    def shift(v, off):
        # shifted[g] = v[(g + off) mod N]; pltpu.roll has jnp.roll semantics -> roll by -off.
        return pltpu.roll(v, (-off) % N, 1)

    def conv3x3(act, w_ref, b_ref):
        # act: (n_in_pad, N) f32 -> (n_out_pad, N) f32.
        # All nine taps fused into a single bf16 MXU matmul of depth 9*n_in.
        slabs = []
        for o, (oy, ox) in enumerate(offsets):
            off = oy * W + ox
            if oy == 0 and ox == 0:
                slabs.append(act)            # centre tap: no shift, no mask needed
            else:
                # Rolled-in lanes are finite activations (never stale VMEM), so the 0/1
                # mask multiply exactly reproduces zero 'same' padding (no NaN risk).
                slabs.append(shift(act, off) * masks[o:o + 1, :])
        stacked = jnp.concatenate(slabs, axis=0)          # (9*n_in, N), 8-aligned rows
        y = jnp.dot(w_ref[...], stacked.astype(bf16),
                    preferred_element_type=f32)           # (n_out, N), f32 accumulate
        return y + b_ref[...]                             # bias (n_out, 1) broadcast

    a0 = jnp.maximum(x_ref[0].astype(f32), 0.0)           # ReLU, (cin_p, N)
    a1 = conv3x3(a0, w1_ref, b1_ref)
    a2 = conv3x3(a1, w2_ref, b2_ref)
    a3 = conv3x3(a2, w3_ref, b3_ref)                      # (cmid_p, N)

    # SDNPool max path: roll shift-tree.  Values are exact at window-corner lanes,
    # which are the only lanes the 0/1 selection matrix smat picks up; every other
    # lane holds finite don't-care values.
    hmax = a3
    for d in range(1, ww):
        hmax = jnp.maximum(hmax, shift(a3, d))
    vmax = hmax
    for d in range(1, wh):
        vmax = jnp.maximum(vmax, shift(hmax, d * W))

    alpha = alpha_ref[0]
    smat = smat_ref[...]                                  # (HW, PP) bf16, 0/1 selection
    amat = amat_ref[...]                                  # (HW, PP) bf16, window average
    rows = []
    for t in range(TB):                                   # per-image, HW-aligned lane slices
        lo, hi = t * HW, (t + 1) * HW
        mx = jnp.dot(vmax[:, lo:hi].astype(bf16), smat, preferred_element_type=f32)
        av = jnp.dot(a3[:, lo:hi].astype(bf16), amat, preferred_element_type=f32)
        rows.append(alpha * mx + (1.0 - alpha) * av)      # (cmid_p, PP)
    m3 = jnp.stack(rows, axis=0)                          # (TB, cmid_p, PP)

    # fc = bias + cascading part + pooled part.  The pooled part fuses the torch
    # channel-major flatten into the host weight layout (cmid, PP, K): one small
    # (TB, PP) @ (PP, K) MXU matmul per real channel -- no sub-lane scatter stores.
    acc = fcb_ref[...] + jnp.dot(casc_ref[0].astype(bf16), wc_ref[...],
                                 preferred_element_type=f32)
    for c in range(cmid):
        acc = acc + jnp.dot(m3[:, c, :].astype(bf16), wp3_ref[c],
                            preferred_element_type=f32)
    out_ref[0] = acc.astype(out_ref.dtype)


def _pool_matrices(H, W, pool_size):
    """Per-image window max-selection and averaging matrices on the flat (h*W + w) axis."""
    P = pool_size
    wh, ww = H // P, W // P
    HW = H * W
    PP = P * P
    smat = np.zeros((HW, PP), np.float32)
    amat = np.zeros((HW, PP), np.float32)
    for h in range(H):
        for w in range(W):
            g = h * W + w
            q = (h // wh) * P + (w // ww)
            amat[g, q] = 1.0 / (wh * ww)
            if h % wh == 0 and w % ww == 0:
                smat[g, q] = 1.0   # window-corner lane: where the shift-tree max lands
    return jnp.asarray(smat, jnp.bfloat16), jnp.asarray(amat, jnp.bfloat16)


def _tap_masks(H, W, TB):
    """(9, TB*H*W) 0/1 masks: per-lane validity of each 3x3 tap under 'same' zero padding."""
    HW = H * W
    N = TB * HW
    g = np.arange(N)
    h = (g // W) % H
    w = g % W
    masks = np.zeros((9, N), np.float32)
    for dy in range(3):
        for dx in range(3):
            oy, ox = dy - 1, dx - 1
            valid = (h + oy >= 0) & (h + oy < H) & (w + ox >= 0) & (w + ox < W)
            masks[dy * 3 + dx] = valid.astype(np.float32)
    return jnp.asarray(masks)


def too_big_conv_cascading_head(x, cascading_input, params, *, pool_size=4,
                                block_batch=None):
    B, cin, H, W = x.shape
    cmid = cin // 2
    K = cascading_input.shape[1]
    P = pool_size
    assert H % P == 0 and W % P == 0, \
        "kernel assumes H, W divisible by pool_size (exact adaptive pooling windows)"
    HW = H * W
    PP = P * P
    cpool = cmid * PP

    # Channel counts padded to the f32 sublane tile (8) so every in-kernel concatenate
    # along the channel axis is tile-aligned; padded channels carry zero weights/biases.
    cin_p = _round_up(cin, 8)
    cmid_p = _round_up(cmid, 8)

    # Images per grid step.  Keep nb = B // TB >= 2 so both v7x TensorCores get work
    # under the "parallel" grid axis; cap at 8 images to bound per-step live values.
    if block_batch is None:
        TB = min(8, max(1, B // 2))
        while B % TB:
            TB -= 1
    else:
        TB = block_batch
    assert B % TB == 0, "block_batch must divide the batch"
    nb = B // TB
    N = TB * HW

    w1, b1, w2, b2, w3, b3, alpha, fc_w, fc_b = params
    bf16 = jnp.bfloat16
    f32 = jnp.float32

    def fuse_taps(w, o_pad, i_pad):
        # torch (O, I, 3, 3) -> (O_pad, 9*I_pad); column = (dy*3+dx)*I_pad + i,
        # matching the kernel's tap-major slab stacking.
        o, i = w.shape[0], w.shape[1]
        wp = jnp.pad(w, ((0, o_pad - o), (0, i_pad - i), (0, 0), (0, 0)))
        return jnp.transpose(wp, (0, 2, 3, 1)).reshape(o_pad, 9 * i_pad).astype(bf16)

    def pad_bias(b):
        return jnp.pad(b, (0, cmid_p - cmid)).reshape(cmid_p, 1).astype(f32)

    # Host-side layout plumbing only (no compute hoisted out of the kernel).
    xp = jnp.pad(x, ((0, 0), (0, cin_p - cin), (0, 0), (0, 0)))
    xr = xp.reshape(nb, TB, cin_p, HW).transpose(0, 2, 1, 3).reshape(nb, cin_p, N)
    casc = cascading_input.reshape(nb, TB, K)
    w1f = fuse_taps(w1, cmid_p, cin_p)
    w2f = fuse_taps(w2, cmid_p, cmid_p)
    w3f = fuse_taps(w3, cmid_p, cmid_p)
    b1c, b2c, b3c = pad_bias(b1), pad_bias(b2), pad_bias(b3)
    # fc pooled rows reshaped to (channel, window, class); cascading rows transposed.
    wp3 = jnp.transpose(fc_w[:, :cpool].reshape(K, cmid, PP), (1, 2, 0)).astype(bf16)
    wc = jnp.transpose(fc_w[:, cpool:]).astype(bf16)                  # (K, K)
    fcb2 = fc_b.reshape(1, K).astype(f32)
    smat, amat = _pool_matrices(H, W, P)                              # (HW, PP) bf16
    masks = _tap_masks(H, W, TB)                                      # (9, N) f32

    def const(*shape):
        zeros = (0,) * len(shape)
        return pl.BlockSpec(shape, lambda b, _z=zeros: _z)

    smem = pl.BlockSpec(memory_space=pltpu.MemorySpace.SMEM)

    grid_spec = pltpu.PrefetchScalarGridSpec(
        num_scalar_prefetch=0,
        grid=(nb,),
        in_specs=[
            pl.BlockSpec((1, cin_p, N), lambda b: (b, 0, 0)),    # activation slab
            pl.BlockSpec((1, TB, K), lambda b: (b, 0, 0)),       # cascading slab
            const(9, N),                                         # tap validity masks
            const(cmid_p, 9 * cin_p), const(cmid_p, 1),          # conv1 fused w / b
            const(cmid_p, 9 * cmid_p), const(cmid_p, 1),         # conv2 fused w / b
            const(cmid_p, 9 * cmid_p), const(cmid_p, 1),         # conv3 fused w / b
            smem,                                                # SDNPool alpha
            const(HW, PP), const(HW, PP),                        # max-select / avg matrices
            const(cmid, PP, K),                                  # fc pooled weight (c,p,k)
            const(K, K),                                         # fc cascading weight
            const(1, K),                                         # fc bias
        ],
        out_specs=pl.BlockSpec((1, TB, K), lambda b: (b, 0, 0)),
    )

    conv_flops = 2 * 9 * HW * (cin_p * cmid_p + 2 * cmid_p * cmid_p)
    pool_flops = 2 * 2 * HW * PP * cmid_p
    fc_flops = 2 * (cpool + K) * K
    cost = pl.CostEstimate(
        flops=B * (conv_flops + pool_flops + fc_flops),
        transcendentals=0,
        bytes_accessed=int(
            x.size * x.dtype.itemsize
            + cascading_input.size * cascading_input.dtype.itemsize
            + B * K * 4
            + (w1f.size + w2f.size + w3f.size + wp3.size + wc.size
               + smat.size + amat.size) * 2
            + (3 * cmid_p + K + masks.size) * 4),
    )

    out = pl.pallas_call(
        functools.partial(_head_kernel, H=H, W=W, TB=TB, pool_size=P),
        out_shape=jax.ShapeDtypeStruct((nb, TB, K), jnp.float32),
        grid_spec=grid_spec,
        compiler_params=pltpu.CompilerParams(
            dimension_semantics=("parallel",),       # images are independent
            vmem_limit_bytes=32 * 1024 * 1024),
        cost_estimate=cost,
    )(xr, casc, masks, w1f, b1c, w2f, b2c, w3f, b3c,
      alpha.astype(f32), smat, amat, wp3, wc, fcb2)
    return out.reshape(B, K)


def _reference_forward(x, cascading_input, params, pool_size):
    w1, b1, w2, b2, w3, b3, alpha, fc_w, fc_b = params
    dn = ("NCHW", "OIHW", "NCHW")
    prec = lax.Precision.HIGHEST
    y = jnp.maximum(x, 0.0)
    y = lax.conv_general_dilated(y, w1, (1, 1), "SAME", dimension_numbers=dn,
                                 precision=prec) + b1[None, :, None, None]
    y = lax.conv_general_dilated(y, w2, (1, 1), "SAME", dimension_numbers=dn,
                                 precision=prec) + b2[None, :, None, None]
    y = lax.conv_general_dilated(y, w3, (1, 1), "SAME", dimension_numbers=dn,
                                 precision=prec) + b3[None, :, None, None]
    B, C, Hh, Ww = y.shape
    P = pool_size
    yr = y.reshape(B, C, P, Hh // P, P, Ww // P)
    maxp = yr.max(axis=(3, 5))
    avgp = yr.mean(axis=(3, 5))
    mixed = alpha[0] * maxp + (1.0 - alpha[0]) * avgp
    flat = mixed.reshape(B, -1)
    feat = jnp.concatenate([flat, cascading_input], axis=-1)
    return jnp.dot(feat, fc_w.T, precision=prec) + fc_b


if __name__ == "__main__":
    B, Cin, H, W = 2, 4, 16, 16          # in_channels=4 -> conv channels = 2
    K = 8                                 # num_classes
    pool = 4
    Cm = Cin // 2
    F = Cm * pool * pool + K

    key = jax.random.PRNGKey(0)
    ks = jax.random.split(key, 11)
    w1 = 0.2 * jax.random.normal(ks[0], (Cm, Cin, 3, 3), jnp.float32)
    b1 = 0.1 * jax.random.normal(ks[1], (Cm,), jnp.float32)
    w2 = 0.2 * jax.random.normal(ks[2], (Cm, Cm, 3, 3), jnp.float32)
    b2 = 0.1 * jax.random.normal(ks[3], (Cm,), jnp.float32)
    w3 = 0.2 * jax.random.normal(ks[4], (Cm, Cm, 3, 3), jnp.float32)
    b3 = 0.1 * jax.random.normal(ks[5], (Cm,), jnp.float32)
    alpha = jax.random.uniform(ks[6], (1,), jnp.float32)          # SDNPool alpha
    fc_w = 0.2 * jax.random.normal(ks[7], (K, F), jnp.float32)
    fc_b = 0.1 * jax.random.normal(ks[8], (K,), jnp.float32)

    x = jax.random.normal(ks[9], (B, Cin, H, W), jnp.float32)
    cascading_input = jax.random.normal(ks[10], (B, K), jnp.float32)

    params = (w1, b1, w2, b2, w3, b3, alpha, fc_w, fc_b)

    out = too_big_conv_cascading_head(x, cascading_input, params, pool_size=pool)
    out = jax.block_until_ready(out)

    ref = _reference_forward(x, cascading_input, params, pool)
    assert out.shape == (B, K)
    # bf16 MXU operands (per perf review) vs. the f32 reference -> modest tolerance.
    if not jnp.allclose(out, ref, rtol=5e-2, atol=5e-2):
        err = jnp.max(jnp.abs(out - ref))
        raise AssertionError(f"mismatch vs reference, max abs err = {err}")
    print("KERNEL_OK")
</pallas_src>

<mosaic_0001>
module attributes {stable_mosaic.version = 11 : i64} {
  func.func @_head_kernel(%arg0: i32, %arg1: memref<1x8x256xf32, #tpu.memory_space<vmem>>, %arg2: memref<1x1x8xf32, #tpu.memory_space<vmem>>, %arg3: memref<9x256xf32, #tpu.memory_space<vmem>>, %arg4: memref<8x72xbf16, #tpu.memory_space<vmem>>, %arg5: memref<8x1xf32, #tpu.memory_space<vmem>>, %arg6: memref<8x72xbf16, #tpu.memory_space<vmem>>, %arg7: memref<8x1xf32, #tpu.memory_space<vmem>>, %arg8: memref<8x72xbf16, #tpu.memory_space<vmem>>, %arg9: memref<8x1xf32, #tpu.memory_space<vmem>>, %arg10: memref<1xf32, #tpu.memory_space<smem>>, %arg11: memref<256x16xbf16, #tpu.memory_space<vmem>>, %arg12: memref<256x16xbf16, #tpu.memory_space<vmem>>, %arg13: memref<2x16x8xbf16, #tpu.memory_space<vmem>>, %arg14: memref<8x8xbf16, #tpu.memory_space<vmem>>, %arg15: memref<1x8xf32, #tpu.memory_space<vmem>>, %arg16: memref<1x1x8xf32, #tpu.memory_space<vmem>>) attributes {dimension_semantics = [#tpu.dimension_semantics<parallel>], iteration_bounds = array<i64: 2>, scalar_prefetch = 0 : i64, scratch_operands = 0 : i64, tpu.core_type = #tpu.core_type<tc>, window_params = [{transform_indices = @transform_0, window_bounds = array<i64: 1, 8, 256>}, {transform_indices = @transform_1, window_bounds = array<i64: 1, 1, 8>}, {pipeline_mode = #tpu.pipeline_mode<synchronous>, transform_indices = @transform_2, window_bounds = array<i64: 9, 256>}, {pipeline_mode = #tpu.pipeline_mode<synchronous>, transform_indices = @transform_3, window_bounds = array<i64: 8, 72>}, {pipeline_mode = #tpu.pipeline_mode<synchronous>, transform_indices = @transform_4, window_bounds = array<i64: 8, 1>}, {pipeline_mode = #tpu.pipeline_mode<synchronous>, transform_indices = @transform_5, window_bounds = array<i64: 8, 72>}, {pipeline_mode = #tpu.pipeline_mode<synchronous>, transform_indices = @transform_6, window_bounds = array<i64: 8, 1>}, {pipeline_mode = #tpu.pipeline_mode<synchronous>, transform_indices = @transform_7, window_bounds = array<i64: 8, 72>}, {pipeline_mode = #tpu.pipeline_mode<synchronous>, transform_indices = @transform_8, window_bounds = array<i64: 8, 1>}, {transform_indices = @transform_9, window_bounds = array<i64: 1>}, {pipeline_mode = #tpu.pipeline_mode<synchronous>, transform_indices = @transform_10, window_bounds = array<i64: 256, 16>}, {pipeline_mode = #tpu.pipeline_mode<synchronous>, transform_indices = @transform_11, window_bounds = array<i64: 256, 16>}, {pipeline_mode = #tpu.pipeline_mode<synchronous>, transform_indices = @transform_12, window_bounds = array<i64: 2, 16, 8>}, {pipeline_mode = #tpu.pipeline_mode<synchronous>, transform_indices = @transform_13, window_bounds = array<i64: 8, 8>}, {pipeline_mode = #tpu.pipeline_mode<synchronous>, transform_indices = @transform_14, window_bounds = array<i64: 1, 8>}, {transform_indices = @transform_15, window_bounds = array<i64: 1, 1, 8>}]} {
    %c0 = arith.constant 0 : index
    %c0_0 = arith.constant 0 : index
    %0 = vector.load %arg3[%c0, %c0_0] : memref<9x256xf32, #tpu.memory_space<vmem>>, vector<9x256xf32>
    %c0_1 = arith.constant 0 : index
    %c0_2 = arith.constant 0 : index
    %c0_3 = arith.constant 0 : index
    %1 = vector.load %arg1[%c0_1, %c0_2, %c0_3] : memref<1x8x256xf32, #tpu.memory_space<vmem>>, vector<1x8x256xf32>
    %2 = vector.shape_cast %1 : vector<1x8x256xf32> to vector<8x256xf32>
    %cst = arith.constant 0.000000e+00 : f32
    %3 = vector.broadcast %cst : f32 to vector<8x256xf32>
    %4 = arith.maximumf %2, %3 : vector<8x256xf32>
    %c17_i32 = arith.constant 17 : i32
    %5 = tpu.dynamic_rotate %4 by %c17_i32 dim 1 : vector<8x256xf32>, i32 -> vector<8x256xf32>
    %6 = vector.extract_strided_slice %0 {offsets = [0, 0], sizes = [1, 256], strides = [1, 1]} : vector<9x256xf32> to vector<1x256xf32>
    %7 = vector.broadcast %6 : vector<1x256xf32> to vector<8x256xf32>
    %8 = arith.mulf %5, %7 : vector<8x256xf32>
    %c16_i32 = arith.constant 16 : i32
    %9 = tpu.dynamic_rotate %4 by %c16_i32 dim 1 : vector<8x256xf32>, i32 -> vector<8x256xf32>
    %10 = vector.extract_strided_slice %0 {offsets = [1, 0], sizes = [1, 256], strides = [1, 1]} : vector<9x256xf32> to vector<1x256xf32>
    %11 = vector.broadcast %10 : vector<1x256xf32> to vector<8x256xf32>
    %12 = arith.mulf %9, %11 : vector<8x256xf32>
    %c15_i32 = arith.constant 15 : i32
    %13 = tpu.dynamic_rotate %4 by %c15_i32 dim 1 : vector<8x256xf32>, i32 -> vector<8x256xf32>
    %14 = vector.extract_strided_slice %0 {offsets = [2, 0], sizes = [1, 256], strides = [1, 1]} : vector<9x256xf32> to vector<1x256xf32>
    %15 = vector.broadcast %14 : vector<1x256xf32> to vector<8x256xf32>
    %16 = arith.mulf %13, %15 : vector<8x256xf32>
    %c1_i32 = arith.constant 1 : i32
    %17 = tpu.dynamic_rotate %4 by %c1_i32 dim 1 : vector<8x256xf32>, i32 -> vector<8x256xf32>
    %18 = vector.extract_strided_slice %0 {offsets = [3, 0], sizes = [1, 256], strides = [1, 1]} : vector<9x256xf32> to vector<1x256xf32>
    %19 = vector.broadcast %18 : vector<1x256xf32> to vector<8x256xf32>
    %20 = arith.mulf %17, %19 : vector<8x256xf32>
    %c255_i32 = arith.constant 255 : i32
    %21 = tpu.dynamic_rotate %4 by %c255_i32 dim 1 : vector<8x256xf32>, i32 -> vector<8x256xf32>
    %22 = vector.extract_strided_slice %0 {offsets = [5, 0], sizes = [1, 256], strides = [1, 1]} : vector<9x256xf32> to vector<1x256xf32>
    %23 = vector.broadcast %22 : vector<1x256xf32> to vector<8x256xf32>
    %24 = arith.mulf %21, %23 : vector<8x256xf32>
    %c241_i32 = arith.constant 241 : i32
    %25 = tpu.dynamic_rotate %4 by %c241_i32 dim 1 : vector<8x256xf32>, i32 -> vector<8x256xf32>
    %26 = vector.extract_strided_slice %0 {offsets = [6, 0], sizes = [1, 256], strides = [1, 1]} : vector<9x256xf32> to vector<1x256xf32>
    %27 = vector.broadcast %26 : vector<1x256xf32> to vector<8x256xf32>
    %28 = arith.mulf %25, %27 : vector<8x256xf32>
    %c240_i32 = arith.constant 240 : i32
    %29 = tpu.dynamic_rotate %4 by %c240_i32 dim 1 : vector<8x256xf32>, i32 -> vector<8x256xf32>
    %30 = vector.extract_strided_slice %0 {offsets = [7, 0], sizes = [1, 256], strides = [1, 1]} : vector<9x256xf32> to vector<1x256xf32>
    %31 = vector.broadcast %30 : vector<1x256xf32> to vector<8x256xf32>
    %32 = arith.mulf %29, %31 : vector<8x256xf32>
    %c239_i32 = arith.constant 239 : i32
    %33 = tpu.dynamic_rotate %4 by %c239_i32 dim 1 : vector<8x256xf32>, i32 -> vector<8x256xf32>
    %34 = vector.extract_strided_slice %0 {offsets = [8, 0], sizes = [1, 256], strides = [1, 1]} : vector<9x256xf32> to vector<1x256xf32>
    %35 = vector.broadcast %34 : vector<1x256xf32> to vector<8x256xf32>
    %36 = arith.mulf %33, %35 : vector<8x256xf32>
    %37 = tpu.concatenate %8, %12, %16, %20, %4, %24, %28, %32, %36 in 0 : vector<8x256xf32>, vector<8x256xf32>, vector<8x256xf32>, vector<8x256xf32>, vector<8x256xf32>, vector<8x256xf32>, vector<8x256xf32>, vector<8x256xf32>, vector<8x256xf32> -> vector<72x256xf32>
    %c0_4 = arith.constant 0 : index
    %c0_5 = arith.constant 0 : index
    %38 = vector.load %arg4[%c0_4, %c0_5] : memref<8x72xbf16, #tpu.memory_space<vmem>>, vector<8x72xbf16>
    %39 = arith.truncf %37 : vector<72x256xf32> to vector<72x256xbf16>
    %cst_6 = arith.constant dense<0.000000e+00> : vector<8x256xf32>
    %40 = tpu.matmul %38, %39, %cst_6 {dimension_numbers = #tpu.dot_dimension_numbers<[1], [0], [0], [1], [0, 0, 1, 1], [], []>} : vector<8x72xbf16>, vector<72x256xbf16>, vector<8x256xf32> -> vector<8x256xf32>
    %c0_7 = arith.constant 0 : index
    %c0_8 = arith.constant 0 : index
    %41 = vector.load %arg5[%c0_7, %c0_8] : memref<8x1xf32, #tpu.memory_space<vmem>>, vector<8x1xf32>
    %42 = vector.broadcast %41 : vector<8x1xf32> to vector<8x256xf32>
    %43 = arith.addf %40, %42 : vector<8x256xf32>
    %c17_i32_9 = arith.constant 17 : i32
    %44 = tpu.dynamic_rotate %43 by %c17_i32_9 dim 1 : vector<8x256xf32>, i32 -> vector<8x256xf32>
    %45 = vector.extract_strided_slice %0 {offsets = [0, 0], sizes = [1, 256], strides = [1, 1]} : vector<9x256xf32> to vector<1x256xf32>
    %46 = vector.broadcast %45 : vector<1x256xf32> to vector<8x256xf32>
    %47 = arith.mulf %44, %46 : vector<8x256xf32>
    %c16_i32_10 = arith.constant 16 : i32
    %48 = tpu.dynamic_rotate %43 by %c16_i32_10 dim 1 : vector<8x256xf32>, i32 -> vector<8x256xf32>
    %49 = vector.extract_strided_slice %0 {offsets = [1, 0], sizes = [1, 256], strides = [1, 1]} : vector<9x256xf32> to vector<1x256xf32>
    %50 = vector.broadcast %49 : vector<1x256xf32> to vector<8x256xf32>
    %51 = arith.mulf %48, %50 : vector<8x256xf32>
    %c15_i32_11 = arith.constant 15 : i32
    %52 = tpu.dynamic_rotate %43 by %c15_i32_11 dim 1 : vector<8x256xf32>, i32 -> vector<8x256xf32>
    %53 = vector.extract_strided_slice %0 {offsets = [2, 0], sizes = [1, 256], strides = [1, 1]} : vector<9x256xf32> to vector<1x256xf32>
    %54 = vector.broadcast %53 : vector<1x256xf32> to vector<8x256xf32>
    %55 = arith.mulf %52, %54 : vector<8x256xf32>
    %c1_i32_12 = arith.constant 1 : i32
    %56 = tpu.dynamic_rotate %43 by %c1_i32_12 dim 1 : vector<8x256xf32>, i32 -> vector<8x256xf32>
    %57 = vector.extract_strided_slice %0 {offsets = [3, 0], sizes = [1, 256], strides = [1, 1]} : vector<9x256xf32> to vector<1x256xf32>
    %58 = vector.broadcast %57 : vector<1x256xf32> to vector<8x256xf32>
    %59 = arith.mulf %56, %58 : vector<8x256xf32>
    %c255_i32_13 = arith.constant 255 : i32
    %60 = tpu.dynamic_rotate %43 by %c255_i32_13 dim 1 : vector<8x256xf32>, i32 -> vector<8x256xf32>
    %61 = vector.extract_strided_slice %0 {offsets = [5, 0], sizes = [1, 256], strides = [1, 1]} : vector<9x256xf32> to vector<1x256xf32>
    %62 = vector.broadcast %61 : vector<1x256xf32> to vector<8x256xf32>
    %63 = arith.mulf %60, %62 : vector<8x256xf32>
    %c241_i32_14 = arith.constant 241 : i32
    %64 = tpu.dynamic_rotate %43 by %c241_i32_14 dim 1 : vector<8x256xf32>, i32 -> vector<8x256xf32>
    %65 = vector.extract_strided_slice %0 {offsets = [6, 0], sizes = [1, 256], strides = [1, 1]} : vector<9x256xf32> to vector<1x256xf32>
    %66 = vector.broadcast %65 : vector<1x256xf32> to vector<8x256xf32>
    %67 = arith.mulf %64, %66 : vector<8x256xf32>
    %c240_i32_15 = arith.constant 240 : i32
    %68 = tpu.dynamic_rotate %43 by %c240_i32_15 dim 1 : vector<8x256xf32>, i32 -> vector<8x256xf32>
    %69 = vector.extract_strided_slice %0 {offsets = [7, 0], sizes = [1, 256], strides = [1, 1]} : vector<9x256xf32> to vector<1x256xf32>
    %70 = vector.broadcast %69 : vector<1x256xf32> to vector<8x256xf32>
    %71 = arith.mulf %68, %70 : vector<8x256xf32>
    %c239_i32_16 = arith.constant 239 : i32
    %72 = tpu.dynamic_rotate %43 by %c239_i32_16 dim 1 : vector<8x256xf32>, i32 -> vector<8x256xf32>
    %73 = vector.extract_strided_slice %0 {offsets = [8, 0], sizes = [1, 256], strides = [1, 1]} : vector<9x256xf32> to vector<1x256xf32>
    %74 = vector.broadcast %73 : vector<1x256xf32> to vector<8x256xf32>
    %75 = arith.mulf %72, %74 : vector<8x256xf32>
    %76 = tpu.concatenate %47, %51, %55, %59, %43, %63, %67, %71, %75 in 0 : vector<8x256xf32>, vector<8x256xf32>, vector<8x256xf32>, vector<8x256xf32>, vector<8x256xf32>, vector<8x256xf32>, vector<8x256xf32>, vector<8x256xf32>, vector<8x256xf32> -> vector<72x256xf32>
    %c0_17 = arith.constant 0 : index
    %c0_18 = arith.constant 0 : index
    %77 = vector.load %arg6[%c0_17, %c0_18] : memref<8x72xbf16, #tpu.memory_space<vmem>>, vector<8x72xbf16>
    %78 = arith.truncf %76 : vector<72x256xf32> to vector<72x256xbf16>
    %cst_19 = arith.constant dense<0.000000e+00> : vector<8x256xf32>
    %79 = tpu.matmul %77, %78, %cst_19 {dimension_numbers = #tpu.dot_dimension_numbers<[1], [0], [0], [1], [0, 0, 1, 1], [], []>} : vector<8x72xbf16>, vector<72x256xbf16>, vector<8x256xf32> -> vector<8x256xf32>
    %c0_20 = arith.constant 0 : index
    %c0_21 = arith.constant 0 : index
    %80 = vector.load %arg7[%c0_20, %c0_21] : memref<8x1xf32, #tpu.memory_space<vmem>>, vector<8x1xf32>
    %81 = vector.broadcast %80 : vector<8x1xf32> to vector<8x256xf32>
    %82 = arith.addf %79, %81 : vector<8x256xf32>
    %c17_i32_22 = arith.constant 17 : i32
    %83 = tpu.dynamic_rotate %82 by %c17_i32_22 dim 1 : vector<8x256xf32>, i32 -> vector<8x256xf32>
    %84 = vector.extract_strided_slice %0 {offsets = [0, 0], sizes = [1, 256], strides = [1, 1]} : vector<9x256xf32> to vector<1x256xf32>
    %85 = vector.broadcast %84 : vector<1x256xf32> to vector<8x256xf32>
    %86 = arith.mulf %83, %85 : vector<8x256xf32>
    %c16_i32_23 = arith.constant 16 : i32
    %87 = tpu.dynamic_rotate %82 by %c16_i32_23 dim 1 : vector<8x256xf32>, i32 -> vector<8x256xf32>
    %88 = vector.extract_strided_slice %0 {offsets = [1, 0], sizes = [1, 256], strides = [1, 1]} : vector<9x256xf32> to vector<1x256xf32>
    %89 = vector.broadcast %88 : vector<1x256xf32> to vector<8x256xf32>
    %90 = arith.mulf %87, %89 : vector<8x256xf32>
    %c15_i32_24 = arith.constant 15 : i32
    %91 = tpu.dynamic_rotate %82 by %c15_i32_24 dim 1 : vector<8x256xf32>, i32 -> vector<8x256xf32>
    %92 = vector.extract_strided_slice %0 {offsets = [2, 0], sizes = [1, 256], strides = [1, 1]} : vector<9x256xf32> to vector<1x256xf32>
    %93 = vector.broadcast %92 : vector<1x256xf32> to vector<8x256xf32>
    %94 = arith.mulf %91, %93 : vector<8x256xf32>
    %c1_i32_25 = arith.constant 1 : i32
    %95 = tpu.dynamic_rotate %82 by %c1_i32_25 dim 1 : vector<8x256xf32>, i32 -> vector<8x256xf32>
    %96 = vector.extract_strided_slice %0 {offsets = [3, 0], sizes = [1, 256], strides = [1, 1]} : vector<9x256xf32> to vector<1x256xf32>
    %97 = vector.broadcast %96 : vector<1x256xf32> to vector<8x256xf32>
    %98 = arith.mulf %95, %97 : vector<8x256xf32>
    %c255_i32_26 = arith.constant 255 : i32
    %99 = tpu.dynamic_rotate %82 by %c255_i32_26 dim 1 : vector<8x256xf32>, i32 -> vector<8x256xf32>
    %100 = vector.extract_strided_slice %0 {offsets = [5, 0], sizes = [1, 256], strides = [1, 1]} : vector<9x256xf32> to vector<1x256xf32>
    %101 = vector.broadcast %100 : vector<1x256xf32> to vector<8x256xf32>
    %102 = arith.mulf %99, %101 : vector<8x256xf32>
    %c241_i32_27 = arith.constant 241 : i32
    %103 = tpu.dynamic_rotate %82 by %c241_i32_27 dim 1 : vector<8x256xf32>, i32 -> vector<8x256xf32>
    %104 = vector.extract_strided_slice %0 {offsets = [6, 0], sizes = [1, 256], strides = [1, 1]} : vector<9x256xf32> to vector<1x256xf32>
    %105 = vector.broadcast %104 : vector<1x256xf32> to vector<8x256xf32>
    %106 = arith.mulf %103, %105 : vector<8x256xf32>
    %c240_i32_28 = arith.constant 240 : i32
    %107 = tpu.dynamic_rotate %82 by %c240_i32_28 dim 1 : vector<8x256xf32>, i32 -> vector<8x256xf32>
    %108 = vector.extract_strided_slice %0 {offsets = [7, 0], sizes = [1, 256], strides = [1, 1]} : vector<9x256xf32> to vector<1x256xf32>
    %109 = vector.broadcast %108 : vector<1x256xf32> to vector<8x256xf32>
    %110 = arith.mulf %107, %109 : vector<8x256xf32>
    %c239_i32_29 = arith.constant 239 : i32
    %111 = tpu.dynamic_rotate %82 by %c239_i32_29 dim 1 : vector<8x256xf32>, i32 -> vector<8x256xf32>
    %112 = vector.extract_strided_slice %0 {offsets = [8, 0], sizes = [1, 256], strides = [1, 1]} : vector<9x256xf32> to vector<1x256xf32>
    %113 = vector.broadcast %112 : vector<1x256xf32> to vector<8x256xf32>
    %114 = arith.mulf %111, %113 : vector<8x256xf32>
    %115 = tpu.concatenate %86, %90, %94, %98, %82, %102, %106, %110, %114 in 0 : vector<8x256xf32>, vector<8x256xf32>, vector<8x256xf32>, vector<8x256xf32>, vector<8x256xf32>, vector<8x256xf32>, vector<8x256xf32>, vector<8x256xf32>, vector<8x256xf32> -> vector<72x256xf32>
    %c0_30 = arith.constant 0 : index
    %c0_31 = arith.constant 0 : index
    %116 = vector.load %arg8[%c0_30, %c0_31] : memref<8x72xbf16, #tpu.memory_space<vmem>>, vector<8x72xbf16>
    %117 = arith.truncf %115 : vector<72x256xf32> to vector<72x256xbf16>
    %cst_32 = arith.constant dense<0.000000e+00> : vector<8x256xf32>
    %118 = tpu.matmul %116, %117, %cst_32 {dimension_numbers = #tpu.dot_dimension_numbers<[1], [0], [0], [1], [0, 0, 1, 1], [], []>} : vector<8x72xbf16>, vector<72x256xbf16>, vector<8x256xf32> -> vector<8x256xf32>
    %c0_33 = arith.constant 0 : index
    %c0_34 = arith.constant 0 : index
    %119 = vector.load %arg9[%c0_33, %c0_34] : memref<8x1xf32, #tpu.memory_space<vmem>>, vector<8x1xf32>
    %120 = vector.broadcast %119 : vector<8x1xf32> to vector<8x256xf32>
    %121 = arith.addf %118, %120 : vector<8x256xf32>
    %c255_i32_35 = arith.constant 255 : i32
    %122 = tpu.dynamic_rotate %121 by %c255_i32_35 dim 1 : vector<8x256xf32>, i32 -> vector<8x256xf32>
    %123 = arith.maximumf %121, %122 : vector<8x256xf32>
    %c254_i32 = arith.constant 254 : i32
    %124 = tpu.dynamic_rotate %121 by %c254_i32 dim 1 : vector<8x256xf32>, i32 -> vector<8x256xf32>
    %125 = arith.maximumf %123, %124 : vector<8x256xf32>
    %c253_i32 = arith.constant 253 : i32
    %126 = tpu.dynamic_rotate %121 by %c253_i32 dim 1 : vector<8x256xf32>, i32 -> vector<8x256xf32>
    %127 = arith.maximumf %125, %126 : vector<8x256xf32>
    %c240_i32_36 = arith.constant 240 : i32
    %128 = tpu.dynamic_rotate %127 by %c240_i32_36 dim 1 : vector<8x256xf32>, i32 -> vector<8x256xf32>
    %129 = arith.maximumf %127, %128 : vector<8x256xf32>
    %c224_i32 = arith.constant 224 : i32
    %130 = tpu.dynamic_rotate %127 by %c224_i32 dim 1 : vector<8x256xf32>, i32 -> vector<8x256xf32>
    %131 = arith.maximumf %129, %130 : vector<8x256xf32>
    %c208_i32 = arith.constant 208 : i32
    %132 = tpu.dynamic_rotate %127 by %c208_i32 dim 1 : vector<8x256xf32>, i32 -> vector<8x256xf32>
    %133 = arith.maximumf %131, %132 : vector<8x256xf32>
    %c0_37 = arith.constant 0 : index
    %134 = memref.load %arg10[%c0_37] : memref<1xf32, #tpu.memory_space<smem>>
    %c0_38 = arith.constant 0 : index
    %c0_39 = arith.constant 0 : index
    %135 = vector.load %arg11[%c0_38, %c0_39] : memref<256x16xbf16, #tpu.memory_space<vmem>>, vector<256x16xbf16>
    %c0_40 = arith.constant 0 : index
    %c0_41 = arith.constant 0 : index
    %136 = vector.load %arg12[%c0_40, %c0_41] : memref<256x16xbf16, #tpu.memory_space<vmem>>, vector<256x16xbf16>
    %137 = arith.truncf %133 : vector<8x256xf32> to vector<8x256xbf16>
    %cst_42 = arith.constant dense<0.000000e+00> : vector<8x16xf32>
    %138 = tpu.matmul %137, %135, %cst_42 {dimension_numbers = #tpu.dot_dimension_numbers<[1], [0], [0], [1], [0, 0, 1, 1], [], []>} : vector<8x256xbf16>, vector<256x16xbf16>, vector<8x16xf32> -> vector<8x16xf32>
    %139 = arith.truncf %121 : vector<8x256xf32> to vector<8x256xbf16>
    %cst_43 = arith.constant dense<0.000000e+00> : vector<8x16xf32>
    %140 = tpu.matmul %139, %136, %cst_43 {dimension_numbers = #tpu.dot_dimension_numbers<[1], [0], [0], [1], [0, 0, 1, 1], [], []>} : vector<8x256xbf16>, vector<256x16xbf16>, vector<8x16xf32> -> vector<8x16xf32>
    %141 = vector.broadcast %134 : f32 to vector<8x16xf32>
    %142 = arith.mulf %141, %138 : vector<8x16xf32>
    %cst_44 = arith.constant 1.000000e+00 : f32
    %143 = arith.subf %cst_44, %134 : f32
    %144 = vector.broadcast %143 : f32 to vector<8x16xf32>
    %145 = arith.mulf %144, %140 : vector<8x16xf32>
    %146 = arith.addf %142, %145 : vector<8x16xf32>
    %147 = vector.shape_cast %146 : vector<8x16xf32> to vector<1x8x16xf32>
    %c0_45 = arith.constant 0 : index
    %c0_46 = arith.constant 0 : index
    %148 = vector.load %arg15[%c0_45, %c0_46] : memref<1x8xf32, #tpu.memory_space<vmem>>, vector<1x8xf32>
    %c0_47 = arith.constant 0 : index
    %c0_48 = arith.constant 0 : index
    %c0_49 = arith.constant 0 : index
    %149 = vector.load %arg2[%c0_47, %c0_48, %c0_49] : memref<1x1x8xf32, #tpu.memory_space<vmem>>, vector<1x1x8xf32>
    %150 = vector.shape_cast %149 : vector<1x1x8xf32> to vector<1x8xf32>
    %151 = arith.truncf %150 : vector<1x8xf32> to vector<1x8xbf16>
    %c0_50 = arith.constant 0 : index
    %c0_51 = arith.constant 0 : index
    %152 = vector.load %arg14[%c0_50, %c0_51] : memref<8x8xbf16, #tpu.memory_space<vmem>>, vector<8x8xbf16>
    %cst_52 = arith.constant dense<0.000000e+00> : vector<1x8xf32>
    %153 = tpu.matmul %151, %152, %cst_52 {dimension_numbers = #tpu.dot_dimension_numbers<[1], [0], [0], [1], [0, 0, 1, 1], [], []>} : vector<1x8xbf16>, vector<8x8xbf16>, vector<1x8xf32> -> vector<1x8xf32>
    %154 = arith.addf %148, %153 : vector<1x8xf32>
    %155 = vector.extract_strided_slice %147 {offsets = [0, 0, 0], sizes = [1, 1, 16], strides = [1, 1, 1]} : vector<1x8x16xf32> to vector<1x1x16xf32>
    %156 = vector.shape_cast %155 : vector<1x1x16xf32> to vector<1x16xf32>
    %157 = arith.truncf %156 : vector<1x16xf32> to vector<1x16xbf16>
    %c0_53 = arith.constant 0 : index
    %c0_54 = arith.constant 0 : index
    %c0_55 = arith.constant 0 : index
    %158 = vector.load %arg13[%c0_53, %c0_54, %c0_55] : memref<2x16x8xbf16, #tpu.memory_space<vmem>>, vector<1x16x8xbf16>
    %159 = vector.shape_cast %158 : vector<1x16x8xbf16> to vector<16x8xbf16>
    %cst_56 = arith.constant dense<0.000000e+00> : vector<1x8xf32>
    %160 = tpu.matmul %157, %159, %cst_56 {dimension_numbers = #tpu.dot_dimension_numbers<[1], [0], [0], [1], [0, 0, 1, 1], [], []>} : vector<1x16xbf16>, vector<16x8xbf16>, vector<1x8xf32> -> vector<1x8xf32>
    %161 = arith.addf %154, %160 : vector<1x8xf32>
    %162 = vector.extract_strided_slice %147 {offsets = [0, 1, 0], sizes = [1, 1, 16], strides = [1, 1, 1]} : vector<1x8x16xf32> to vector<1x1x16xf32>
    %163 = vector.shape_cast %162 : vector<1x1x16xf32> to vector<1x16xf32>
    %164 = arith.truncf %163 : vector<1x16xf32> to vector<1x16xbf16>
    %c1 = arith.constant 1 : index
    %c0_57 = arith.constant 0 : index
    %c0_58 = arith.constant 0 : index
    %165 = vector.load %arg13[%c1, %c0_57, %c0_58] : memref<2x16x8xbf16, #tpu.memory_space<vmem>>, vector<1x16x8xbf16>
    %166 = vector.shape_cast %165 : vector<1x16x8xbf16> to vector<16x8xbf16>
    %cst_59 = arith.constant dense<0.000000e+00> : vector<1x8xf32>
    %167 = tpu.matmul %164, %166, %cst_59 {dimension_numbers = #tpu.dot_dimension_numbers<[1], [0], [0], [1], [0, 0, 1, 1], [], []>} : vector<1x16xbf16>, vector<16x8xbf16>, vector<1x8xf32> -> vector<1x8xf32>
    %168 = arith.addf %161, %167 : vector<1x8xf32>
    %c0_60 = arith.constant 0 : index
    %c0_61 = arith.constant 0 : index
    %c0_62 = arith.constant 0 : index
    %169 = vector.load %arg16[%c0_60, %c0_61, %c0_62] : memref<1x1x8xf32, #tpu.memory_space<vmem>>, vector<1x1x8xf32>
    %170 = vector.shape_cast %169 : vector<1x1x8xf32> to vector<1x8xf32>
    %171 = vector.shape_cast %168 : vector<1x8xf32> to vector<1x1x8xf32>
    tpu.vector_store %arg16[%c0_60, %c0_61, %c0_62], %171 {strides = array<i32>} : memref<1x1x8xf32, #tpu.memory_space<vmem>>, vector<1x1x8xf32>,
    return
  }
  func.func @transform_0(%arg0: i32) -> (i32, i32, i32) {
    %c0_i32 = arith.constant 0 : i32
    %c0_i32_0 = arith.constant 0 : i32
    %c0_i32_1 = arith.constant 0 : i32
    return %arg0, %c0_i32, %c0_i32_0 : i32, i32, i32
  }
  func.func @transform_1(%arg0: i32) -> (i32, i32, i32) {
    %c0_i32 = arith.constant 0 : i32
    %c0_i32_0 = arith.constant 0 : i32
    %c0_i32_1 = arith.constant 0 : i32
    return %arg0, %c0_i32, %c0_i32_0 : i32, i32, i32
  }
  func.func @transform_2(%arg0: i32) -> (i32, i32) {
    %c0_i32 = arith.constant 0 : i32
    %c0_i32_0 = arith.constant 0 : i32
    %c0_i32_1 = arith.constant 0 : i32
    return %c0_i32, %c0_i32_0 : i32, i32
  }
  func.func @transform_3(%arg0: i32) -> (i32, i32) {
    %c0_i32 = arith.constant 0 : i32
    %c0_i32_0 = arith.constant 0 : i32
    %c0_i32_1 = arith.constant 0 : i32
    return %c0_i32, %c0_i32_0 : i32, i32
  }
  func.func @transform_4(%arg0: i32) -> (i32, i32) {
    %c0_i32 = arith.constant 0 : i32
    %c0_i32_0 = arith.constant 0 : i32
    %c0_i32_1 = arith.constant 0 : i32
    return %c0_i32, %c0_i32_0 : i32, i32
  }
  func.func @transform_5(%arg0: i32) -> (i32, i32) {
    %c0_i32 = arith.constant 0 : i32
    %c0_i32_0 = arith.constant 0 : i32
    %c0_i32_1 = arith.constant 0 : i32
    return %c0_i32, %c0_i32_0 : i32, i32
  }
  func.func @transform_6(%arg0: i32) -> (i32, i32) {
    %c0_i32 = arith.constant 0 : i32
    %c0_i32_0 = arith.constant 0 : i32
    %c0_i32_1 = arith.constant 0 : i32
    return %c0_i32, %c0_i32_0 : i32, i32
  }
  func.func @transform_7(%arg0: i32) -> (i32, i32) {
    %c0_i32 = arith.constant 0 : i32
    %c0_i32_0 = arith.constant 0 : i32
    %c0_i32_1 = arith.constant 0 : i32
    return %c0_i32, %c0_i32_0 : i32, i32
  }
  func.func @transform_8(%arg0: i32) -> (i32, i32) {
    %c0_i32 = arith.constant 0 : i32
    %c0_i32_0 = arith.constant 0 : i32
    %c0_i32_1 = arith.constant 0 : i32
    return %c0_i32, %c0_i32_0 : i32, i32
  }
  func.func @transform_9(%arg0: i32) -> i32 {
    %c0_i32 = arith.constant 0 : i32
    %c0_i32_0 = arith.constant 0 : i32
    return %c0_i32 : i32
  }
  func.func @transform_10(%arg0: i32) -> (i32, i32) {
    %c0_i32 = arith.constant 0 : i32
    %c0_i32_0 = arith.constant 0 : i32
    %c0_i32_1 = arith.constant 0 : i32
    return %c0_i32, %c0_i32_0 : i32, i32
  }
  func.func @transform_11(%arg0: i32) -> (i32, i32) {
    %c0_i32 = arith.constant 0 : i32
    %c0_i32_0 = arith.constant 0 : i32
    %c0_i32_1 = arith.constant 0 : i32
    return %c0_i32, %c0_i32_0 : i32, i32
  }
  func.func @transform_12(%arg0: i32) -> (i32, i32, i32) {
    %c0_i32 = arith.constant 0 : i32
    %c0_i32_0 = arith.constant 0 : i32
    %c0_i32_1 = arith.constant 0 : i32
    %c0_i32_2 = arith.constant 0 : i32
    return %c0_i32, %c0_i32_0, %c0_i32_1 : i32, i32, i32
  }
  func.func @transform_13(%arg0: i32) -> (i32, i32) {
    %c0_i32 = arith.constant 0 : i32
    %c0_i32_0 = arith.constant 0 : i32
    %c0_i32_1 = arith.constant 0 : i32
    return %c0_i32, %c0_i32_0 : i32, i32
  }
  func.func @transform_14(%arg0: i32) -> (i32, i32) {
    %c0_i32 = arith.constant 0 : i32
    %c0_i32_0 = arith.constant 0 : i32
    %c0_i32_1 = arith.constant 0 : i32
    return %c0_i32, %c0_i32_0 : i32, i32
  }
  func.func @transform_15(%arg0: i32) -> (i32, i32, i32) {
    %c0_i32 = arith.constant 0 : i32
    %c0_i32_0 = arith.constant 0 : i32
    %c0_i32_1 = arith.constant 0 : i32
    return %arg0, %c0_i32, %c0_i32_0 : i32, i32, i32
  }
}

</mosaic_0001>

<llo_original>
// kernel: tpu_custom_call.1
$region0: #{tpu_custom_call.1}
  #allocation0 [shape = 'u32[]', space=smem, size = 0x4, offset = 0x4, fixed_abs, tag = 'smem constant byte address 0x4 - core index']
  #allocation1 [shape = 'u32[144,128]{1,0:T(1,128)}', space=vmem, size = 0x12000, scoped, tag = 'internal scratch']
  #allocation2 [shape = 'f32[1]{0:T(128)S(6)}', space=smem, size = 0x200, scoped, tag = 'scoped memory for tpu_custom_call.1']
  %s0 = inlined_call_operand.vmem [shape: f32[2,8,256], index: 0, kind: input, shape index: {}]
  %s1 = inlined_call_operand.vmem [shape: f32[2,1,8], index: 1, kind: input, shape index: {}]
  %s2 = inlined_call_operand.vmem [shape: f32[9,256], index: 2, kind: input, shape index: {}]
  %s3 = inlined_call_operand.vmem [shape: bf16[8,72], index: 3, kind: input, shape index: {}]
  %s4 = inlined_call_operand.vmem [shape: f32[8,1], index: 4, kind: input, shape index: {}]
  %s5 = inlined_call_operand.vmem [shape: bf16[8,72], index: 5, kind: input, shape index: {}]
  %s6 = inlined_call_operand.vmem [shape: f32[8,1], index: 6, kind: input, shape index: {}]
  %s7 = inlined_call_operand.vmem [shape: bf16[8,72], index: 7, kind: input, shape index: {}]
  %s8 = inlined_call_operand.vmem [shape: f32[8,1], index: 8, kind: input, shape index: {}]
  %s9 = inlined_call_operand.<no memory space> [shape: f32[1], index: 9, kind: input, shape index: {}]
  %s10 = inlined_call_operand.vmem [shape: bf16[256,16], index: 10, kind: input, shape index: {}]
  %s11 = inlined_call_operand.vmem [shape: bf16[256,16], index: 11, kind: input, shape index: {}]
  %s12 = inlined_call_operand.vmem [shape: bf16[2,16,8], index: 12, kind: input, shape index: {}]
  %s13 = inlined_call_operand.vmem [shape: bf16[8,8], index: 13, kind: input, shape index: {}]
  %s14 = inlined_call_operand.vmem [shape: f32[1,8], index: 14, kind: input, shape index: {}]
  %s15 = inlined_call_operand.hbm [shape: f32[2,1,8], index: 15, kind: output, shape index: {}]
  %s16 = sld [smem:[#allocation0]]
  $region93: #{tpu_custom_call.1} parent=0
    _
  %s18 = ssub.s32 1, %s16
  %s19 = scalar_select 0, %s18, %s16
  %20 = sst [smem:[#allocation2]] %s9
  $region1: #{tpu_custom_call.1} parent=0
    #allocation3 [shape = 'u8[1024]{0}', space=vmem, size = 0x400, scoped, tag = 'output window, operand 0']
    #allocation4 [shape = 's32[2]{0}', space=sflag, size = 0x8, scoped, tag = 'scoped memory for tpu_custom_call.1']
    %21 = vsyncpa [#allocation4], 0
    %s22 = scalar_lea.sflag [#allocation4], 1
    %23 = vsyncpa %s22, 0
    loop: start=0, step=1, limit=4
    $region2: #{tpu_custom_call.1} parent=1 // loop_pre_header
      _
    $region3: #{tpu_custom_call.1} parent=1 // loop_header
      %s25 = sphi 0, %s29
      %p26 = scmp.ge.s32.totalorder %s25, 4
      %s35 = sphi 0, %s37
      %s38 = sphi 0, %s35
      %s39 = sphi 0, %s38
      %s55 = sphi 0, %s39
      %s61 = sphi 0, %s63
      %s64 = sphi 0, %s61
      %s65 = sphi 0, %s64
      %s81 = sphi 0, %s65
      %s85 = sphi 0, %s85
      %s87 = sphi 0, %s85
      %s88 = sphi 0, %s87
      %s102 = sphi 0, %s88
      %s106 = sphi 0, %s106
      %s108 = sphi 0, %s106
      %s109 = sphi 0, %s108
      %s123 = sphi 0, %s109
      %s127 = sphi 0, %s127
      %s129 = sphi 0, %s127
      %s130 = sphi 0, %s129
      %s144 = sphi 0, %s130
      %s148 = sphi 0, %s148
      %s150 = sphi 0, %s148
      %s151 = sphi 0, %s150
      %s165 = sphi 0, %s151
      %s169 = sphi 0, %s169
      %s171 = sphi 0, %s169
      %s172 = sphi 0, %s171
      %s186 = sphi 0, %s172
      %s190 = sphi 0, %s190
      %s192 = sphi 0, %s190
      %s193 = sphi 0, %s192
      %s207 = sphi 0, %s193
      %s211 = sphi 0, %s211
      %s213 = sphi 0, %s211
      %s214 = sphi 0, %s213
      %s228 = sphi 0, %s214
      %s232 = sphi 0, %s232
      %s234 = sphi 0, %s232
      %s235 = sphi 0, %s234
      %s249 = sphi 0, %s235
      %s253 = sphi 0, %s253
      %s255 = sphi 0, %s253
      %s256 = sphi 0, %s255
      %s270 = sphi 0, %s256
      %s274 = sphi 0, %s274
      %s276 = sphi 0, %s274
      %s277 = sphi 0, %s276
      %s291 = sphi 0, %s277
      %s295 = sphi 0, %s295
      %s297 = sphi 0, %s295
      %s298 = sphi 0, %s297
      %s312 = sphi 0, %s298
      %s316 = sphi 0, %s316
      %s318 = sphi 0, %s316
      %s319 = sphi 0, %s318
      %s333 = sphi 0, %s319
      %s337 = sphi 0, %s337
      %s339 = sphi 0, %s337
      %s340 = sphi 0, %s339
      %s354 = sphi 0, %s340
      %s360 = sphi 0, %s362
      %s363 = sphi 0, %s360
      %s364 = sphi 0, %s363
      %s380 = sphi 0, %s364
    $region4: #{tpu_custom_call.1} parent=1 // loop_header_branch
      %28 = sbr.rel (%p26) target = $region8
    $region5: #{tpu_custom_call.1} parent=1 // loop_body
      %s30 = ssub.s32 %s25, 1
      %s31 = ssub.s32 %s25, 2
      %s32 = sadd.s32 %s25, 1
      %s33 = ssub.s32 %s25, %s32
      %p34 = scmp.eq.s32.totalorder %s33, 0
      %s36 = sadd.s32 %s35, 1
      %s37 = scalar_select %p34, %s35, %s36
      %p40 = pneg %p34
      %p41 = scmp.eq.s32.totalorder %s25, 1
      %p42 = por %p40, %p41
      %p43 = scmp.ne.s32.totalorder %s35, %s38
      %p44 = scmp.eq.s32.totalorder %s25, 0
      %p45 = por %p43, %p44
      %p46 = scmp.ne.s32.totalorder %s35, %s38
      %p47 = scmp.eq.s32.totalorder %s30, 1
      %p48 = por %p46, %p47
      %p49 = scmp.ne.s32.totalorder %s38, %s39
      %p50 = scmp.eq.s32.totalorder %s30, 0
      %p51 = por %p49, %p50
      %p52 = scmp.ne.s32.totalorder %s38, %s39
      %p53 = scmp.eq.s32.totalorder %s31, 1
      %p54 = por %p52, %p53
      %p56 = scmp.ne.s32.totalorder %s39, %s55
      %p57 = scmp.eq.s32.totalorder %s31, 0
      %p58 = por %p56, %p57
      %s59 = ssub.s32 %s25, %s32
      %p60 = scmp.eq.s32.totalorder %s59, 0
      %s62 = sadd.s32 %s61, 1
      %s63 = scalar_select %p60, %s61, %s62
      %p66 = pneg %p60
      %p67 = scmp.eq.s32.totalorder %s25, 1
      %p68 = por %p66, %p67
      %p69 = scmp.ne.s32.totalorder %s61, %s64
      %p70 = scmp.eq.s32.totalorder %s25, 0
      %p71 = por %p69, %p70
      %p72 = scmp.ne.s32.totalorder %s61, %s64
      %p73 = scmp.eq.s32.totalorder %s30, 1
      %p74 = por %p72, %p73
      %p75 = scmp.ne.s32.totalorder %s64, %s65
      %p76 = scmp.eq.s32.totalorder %s30, 0
      %p77 = por %p75, %p76
      %p78 = scmp.ne.s32.totalorder %s64, %s65
      %p79 = scmp.eq.s32.totalorder %s31, 1
      %p80 = por %p78, %p79
      %p82 = scmp.ne.s32.totalorder %s65, %s81
      %p83 = scmp.eq.s32.totalorder %s31, 0
      %p84 = por %p82, %p83
      %s86 = sadd.s32 %s85, 1
      %p89 = scmp.eq.s32.totalorder %s25, 1
      %p90 = scmp.ne.s32.totalorder %s85, %s87
      %p91 = scmp.eq.s32.totalorder %s25, 0
      %p92 = por %p90, %p91
      %p93 = scmp.ne.s32.totalorder %s85, %s87
      %p94 = scmp.eq.s32.totalorder %s30, 1
      %p95 = por %p93, %p94
      %p96 = scmp.ne.s32.totalorder %s87, %s88
      %p97 = scmp.eq.s32.totalorder %s30, 0
      %p98 = por %p96, %p97
      %p99 = scmp.ne.s32.totalorder %s87, %s88
      %p100 = scmp.eq.s32.totalorder %s31, 1
      %p101 = por %p99, %p100
      %p103 = scmp.ne.s32.totalorder %s88, %s102
      %p104 = scmp.eq.s32.totalorder %s31, 0
      %p105 = por %p103, %p104
      %s107 = sadd.s32 %s106, 1
      %p110 = scmp.eq.s32.totalorder %s25, 1
      %p111 = scmp.ne.s32.totalorder %s106, %s108
      %p112 = scmp.eq.s32.totalorder %s25, 0
      %p113 = por %p111, %p112
      %p114 = scmp.ne.s32.totalorder %s106, %s108
      %p115 = scmp.eq.s32.totalorder %s30, 1
      %p116 = por %p114, %p115
      %p117 = scmp.ne.s32.totalorder %s108, %s109
      %p118 = scmp.eq.s32.totalorder %s30, 0
      %p119 = por %p117, %p118
      %p120 = scmp.ne.s32.totalorder %s108, %s109
      %p121 = scmp.eq.s32.totalorder %s31, 1
      %p122 = por %p120, %p121
      %p124 = scmp.ne.s32.totalorder %s109, %s123
      %p125 = scmp.eq.s32.totalorder %s31, 0
      %p126 = por %p124, %p125
      %s128 = sadd.s32 %s127, 1
      %p131 = scmp.eq.s32.totalorder %s25, 1
      %p132 = scmp.ne.s32.totalorder %s127, %s129
      %p133 = scmp.eq.s32.totalorder %s25, 0
      %p134 = por %p132, %p133
      %p135 = scmp.ne.s32.totalorder %s127, %s129
      %p136 = scmp.eq.s32.totalorder %s30, 1
      %p137 = por %p135, %p136
      %p138 = scmp.ne.s32.totalorder %s129, %s130
      %p139 = scmp.eq.s32.totalorder %s30, 0
      %p140 = por %p138, %p139
      %p141 = scmp.ne.s32.totalorder %s129, %s130
      %p142 = scmp.eq.s32.totalorder %s31, 1
      %p143 = por %p141, %p142
      %p145 = scmp.ne.s32.totalorder %s130, %s144
      %p146 = scmp.eq.s32.totalorder %s31, 0
      %p147 = por %p145, %p146
      %s149 = sadd.s32 %s148, 1
      %p152 = scmp.eq.s32.totalorder %s25, 1
      %p153 = scmp.ne.s32.totalorder %s148, %s150
      %p154 = scmp.eq.s32.totalorder %s25, 0
      %p155 = por %p153, %p154
      %p156 = scmp.ne.s32.totalorder %s148, %s150
      %p157 = scmp.eq.s32.totalorder %s30, 1
      %p158 = por %p156, %p157
      %p159 = scmp.ne.s32.totalorder %s150, %s151
      %p160 = scmp.eq.s32.totalorder %s30, 0
      %p161 = por %p159, %p160
      %p162 = scmp.ne.s32.totalorder %s150, %s151
      %p163 = scmp.eq.s32.totalorder %s31, 1
      %p164 = por %p162, %p163
      %p166 = scmp.ne.s32.totalorder %s151, %s165
      %p167 = scmp.eq.s32.totalorder %s31, 0
      %p168 = por %p166, %p167
      %s170 = sadd.s32 %s169, 1
      %p173 = scmp.eq.s32.totalorder %s25, 1
      %p174 = scmp.ne.s32.totalorder %s169, %s171
      %p175 = scmp.eq.s32.totalorder %s25, 0
      %p176 = por %p174, %p175
      %p177 = scmp.ne.s32.totalorder %s169, %s171
      %p178 = scmp.eq.s32.totalorder %s30, 1
      %p179 = por %p177, %p178
      %p180 = scmp.ne.s32.totalorder %s171, %s172
      %p181 = scmp.eq.s32.totalorder %s30, 0
      %p182 = por %p180, %p181
      %p183 = scmp.ne.s32.totalorder %s171, %s172
      %p184 = scmp.eq.s32.totalorder %s31, 1
      %p185 = por %p183, %p184
      %p187 = scmp.ne.s32.totalorder %s172, %s186
      %p188 = scmp.eq.s32.totalorder %s31, 0
      %p189 = por %p187, %p188
      %s191 = sadd.s32 %s190, 1
      %p194 = scmp.eq.s32.totalorder %s25, 1
      %p195 = scmp.ne.s32.totalorder %s190, %s192
      %p196 = scmp.eq.s32.totalorder %s25, 0
      %p197 = por %p195, %p196
      %p198 = scmp.ne.s32.totalorder %s190, %s192
      %p199 = scmp.eq.s32.totalorder %s30, 1
      %p200 = por %p198, %p199
      %p201 = scmp.ne.s32.totalorder %s192, %s193
      %p202 = scmp.eq.s32.totalorder %s30, 0
      %p203 = por %p201, %p202
      %p204 = scmp.ne.s32.totalorder %s192, %s193
      %p205 = scmp.eq.s32.totalorder %s31, 1
      %p206 = por %p204, %p205
      %p208 = scmp.ne.s32.totalorder %s193, %s207
      %p209 = scmp.eq.s32.totalorder %s31, 0
      %p210 = por %p208, %p209
      %s212 = sadd.s32 %s211, 1
      %p215 = scmp.eq.s32.totalorder %s25, 1
      %p216 = scmp.ne.s32.totalorder %s211, %s213
      %p217 = scmp.eq.s32.totalorder %s25, 0
      %p218 = por %p216, %p217
      %p219 = scmp.ne.s32.totalorder %s211, %s213
      %p220 = scmp.eq.s32.totalorder %s30, 1
      %p221 = por %p219, %p220
      %p222 = scmp.ne.s32.totalorder %s213, %s214
      %p223 = scmp.eq.s32.totalorder %s30, 0
      %p224 = por %p222, %p223
      %p225 = scmp.ne.s32.totalorder %s213, %s214
      %p226 = scmp.eq.s32.totalorder %s31, 1
      %p227 = por %p225, %p226
      %p229 = scmp.ne.s32.totalorder %s214, %s228
      %p230 = scmp.eq.s32.totalorder %s31, 0
      %p231 = por %p229, %p230
      %s233 = sadd.s32 %s232, 1
      %p236 = scmp.eq.s32.totalorder %s25, 1
      %p237 = scmp.ne.s32.totalorder %s232, %s234
      %p238 = scmp.eq.s32.totalorder %s25, 0
      %p239 = por %p237, %p238
      %p240 = scmp.ne.s32.totalorder %s232, %s234
      %p241 = scmp.eq.s32.totalorder %s30, 1
      %p242 = por %p240, %p241
      %p243 = scmp.ne.s32.totalorder %s234, %s235
      %p244 = scmp.eq.s32.totalorder %s30, 0
      %p245 = por %p243, %p244
      %p246 = scmp.ne.s32.totalorder %s234, %s235
      %p247 = scmp.eq.s32.totalorder %s31, 1
      %p248 = por %p246, %p247
      %p250 = scmp.ne.s32.totalorder %s235, %s249
      %p251 = scmp.eq.s32.totalorder %s31, 0
      %p252 = por %p250, %p251
      %s254 = sadd.s32 %s253, 1
      %p257 = scmp.eq.s32.totalorder %s25, 1
      %p258 = scmp.ne.s32.totalorder %s253, %s255
      %p259 = scmp.eq.s32.totalorder %s25, 0
      %p260 = por %p258, %p259
      %p261 = scmp.ne.s32.totalorder %s253, %s255
      %p262 = scmp.eq.s32.totalorder %s30, 1
      %p263 = por %p261, %p262
      %p264 = scmp.ne.s32.totalorder %s255, %s256
      %p265 = scmp.eq.s32.totalorder %s30, 0
      %p266 = por %p264, %p265
      %p267 = scmp.ne.s32.totalorder %s255, %s256
      %p268 = scmp.eq.s32.totalorder %s31, 1
      %p269 = por %p267, %p268
      %p271 = scmp.ne.s32.totalorder %s256, %s270
      %p272 = scmp.eq.s32.totalorder %s31, 0
      %p273 = por %p271, %p272
      %s275 = sadd.s32 %s274, 1
      %p278 = scmp.eq.s32.totalorder %s25, 1
      %p279 = scmp.ne.s32.totalorder %s274, %s276
      %p280 = scmp.eq.s32.totalorder %s25, 0
      %p281 = por %p279, %p280
      %p282 = scmp.ne.s32.totalorder %s274, %s276
      %p283 = scmp.eq.s32.totalorder %s30, 1
      %p284 = por %p282, %p283
      %p285 = scmp.ne.s32.totalorder %s276, %s277
      %p286 = scmp.eq.s32.totalorder %s30, 0
      %p287 = por %p285, %p286
      %p288 = scmp.ne.s32.totalorder %s276, %s277
      %p289 = scmp.eq.s32.totalorder %s31, 1
      %p290 = por %p288, %p289
      %p292 = scmp.ne.s32.totalorder %s277, %s291
      %p293 = scmp.eq.s32.totalorder %s31, 0
      %p294 = por %p292, %p293
      %s296 = sadd.s32 %s295, 1
      %p299 = scmp.eq.s32.totalorder %s25, 1
      %p300 = scmp.ne.s32.totalorder %s295, %s297
      %p301 = scmp.eq.s32.totalorder %s25, 0
      %p302 = por %p300, %p301
      %p303 = scmp.ne.s32.totalorder %s295, %s297
      %p304 = scmp.eq.s32.totalorder %s30, 1
      %p305 = por %p303, %p304
      %p306 = scmp.ne.s32.totalorder %s297, %s298
      %p307 = scmp.eq.s32.totalorder %s30, 0
      %p308 = por %p306, %p307
      %p309 = scmp.ne.s32.totalorder %s297, %s298
      %p310 = scmp.eq.s32.totalorder %s31, 1
      %p311 = por %p309, %p310
      %p313 = scmp.ne.s32.totalorder %s298, %s312
      %p314 = scmp.eq.s32.totalorder %s31, 0
      %p315 = por %p313, %p314
      %s317 = sadd.s32 %s316, 1
      %p320 = scmp.eq.s32.totalorder %s25, 1
      %p321 = scmp.ne.s32.totalorder %s316, %s318
      %p322 = scmp.eq.s32.totalorder %s25, 0
      %p323 = por %p321, %p322
      %p324 = scmp.ne.s32.totalorder %s316, %s318
      %p325 = scmp.eq.s32.totalorder %s30, 1
      %p326 = por %p324, %p325
      %p327 = scmp.ne.s32.totalorder %s318, %s319
      %p328 = scmp.eq.s32.totalorder %s30, 0
      %p329 = por %p327, %p328
      %p330 = scmp.ne.s32.totalorder %s318, %s319
      %p331 = scmp.eq.s32.totalorder %s31, 1
      %p332 = por %p330, %p331
      %p334 = scmp.ne.s32.totalorder %s319, %s333
      %p335 = scmp.eq.s32.totalorder %s31, 0
      %p336 = por %p334, %p335
      %s338 = sadd.s32 %s337, 1
      %p341 = scmp.eq.s32.totalorder %s25, 1
      %p342 = scmp.ne.s32.totalorder %s337, %s339
      %p343 = scmp.eq.s32.totalorder %s25, 0
      %p344 = por %p342, %p343
      %p345 = scmp.ne.s32.totalorder %s337, %s339
      %p346 = scmp.eq.s32.totalorder %s30, 1
      %p347 = por %p345, %p346
      %p348 = scmp.ne.s32.totalorder %s339, %s340
      %p349 = scmp.eq.s32.totalorder %s30, 0
      %p350 = por %p348, %p349
      %p351 = scmp.ne.s32.totalorder %s339, %s340
      %p352 = scmp.eq.s32.totalorder %s31, 1
      %p353 = por %p351, %p352
      %p355 = scmp.ne.s32.totalorder %s340, %s354
      %p356 = scmp.eq.s32.totalorder %s31, 0
      %p357 = por %p355, %p356
      %s358 = ssub.s32 %s25, %s32
      %p359 = scmp.eq.s32.totalorder %s358, 0
      %s361 = sadd.s32 %s360, 1
      %s362 = scalar_select %p359, %s360, %s361
      %p365 = pneg %p359
      %p366 = scmp.eq.s32.totalorder %s25, 1
      %p367 = por %p365, %p366
      %p368 = scmp.ne.s32.totalorder %s360, %s363
      %p369 = scmp.eq.s32.totalorder %s25, 0
      %p370 = por %p368, %p369
      %p371 = scmp.ne.s32.totalorder %s360, %s363
      %p372 = scmp.eq.s32.totalorder %s30, 1
      %p373 = por %p371, %p372
      %p374 = scmp.ne.s32.totalorder %s363, %s364
      %p375 = scmp.eq.s32.totalorder %s30, 0
      %p376 = por %p374, %p375
      %p377 = scmp.ne.s32.totalorder %s363, %s364
      %p378 = scmp.eq.s32.totalorder %s31, 1
      %p379 = por %p377, %p378
      %p381 = scmp.ne.s32.totalorder %s364, %s380
      %p382 = scmp.eq.s32.totalorder %s31, 0
      %p383 = por %p381, %p382
      %p384 = scmp.le.s32.totalorder 1, %s25
      %p385 = scmp.lt.s32.totalorder %s25, 3
      %p386 = pnand %p384, %p385
      %p387 = pneg %p386
      // Predicated region
      $region9: #{tpu_custom_call.1} parent=5 // pred_check
        _
      $region10: #{tpu_custom_call.1} parent=5 // pred_check_branch
        %389 = sbr.rel (%p386) target = $region12
      $region11: #{tpu_custom_call.1} parent=5 // pred_region
        %s390 = ssub.s32 %s25, 1
        // Predicated region
        $region13: #{tpu_custom_call.1} parent=11 // pred_check
          %p391 = pneg %p98
        $region14: #{tpu_custom_call.1} parent=11 // pred_check_branch
          %393 = sbr.rel (%p391) target = $region16
        $region15: #{tpu_custom_call.1} parent=11 // pred_region
          _
        $region16: #{tpu_custom_call.1} parent=11 // pred_fallthru
          _
        // Predicated region
        $region17: #{tpu_custom_call.1} parent=11 // pred_check
          %p394 = pneg %p119
        $region18: #{tpu_custom_call.1} parent=11 // pred_check_branch
          %396 = sbr.rel (%p394) target = $region20
        $region19: #{tpu_custom_call.1} parent=11 // pred_region
          _
        $region20: #{tpu_custom_call.1} parent=11 // pred_fallthru
          _
        // Predicated region
        $region21: #{tpu_custom_call.1} parent=11 // pred_check
          %p397 = pneg %p140
        $region22: #{tpu_custom_call.1} parent=11 // pred_check_branch
          %399 = sbr.rel (%p397) target = $region24
        $region23: #{tpu_custom_call.1} parent=11 // pred_region
          _
        $region24: #{tpu_custom_call.1} parent=11 // pred_fallthru
          _
        // Predicated region
        $region25: #{tpu_custom_call.1} parent=11 // pred_check
          %p400 = pneg %p161
        $region26: #{tpu_custom_call.1} parent=11 // pred_check_branch
          %402 = sbr.rel (%p400) target = $region28
        $region27: #{tpu_custom_call.1} parent=11 // pred_region
          _
        $region28: #{tpu_custom_call.1} parent=11 // pred_fallthru
          _
        // Predicated region
        $region29: #{tpu_custom_call.1} parent=11 // pred_check
          %p403 = pneg %p182
        $region30: #{tpu_custom_call.1} parent=11 // pred_check_branch
          %405 = sbr.rel (%p403) target = $region32
        $region31: #{tpu_custom_call.1} parent=11 // pred_region
          _
        $region32: #{tpu_custom_call.1} parent=11 // pred_fallthru
          _
        // Predicated region
        $region33: #{tpu_custom_call.1} parent=11 // pred_check
          %p406 = pneg %p203
        $region34: #{tpu_custom_call.1} parent=11 // pred_check_branch
          %408 = sbr.rel (%p406) target = $region36
        $region35: #{tpu_custom_call.1} parent=11 // pred_region
          _
        $region36: #{tpu_custom_call.1} parent=11 // pred_fallthru
          _
        // Predicated region
        $region37: #{tpu_custom_call.1} parent=11 // pred_check
          %p409 = pneg %p224
        $region38: #{tpu_custom_call.1} parent=11 // pred_check_branch
          %411 = sbr.rel (%p409) target = $region40
        $region39: #{tpu_custom_call.1} parent=11 // pred_region
          _
        $region40: #{tpu_custom_call.1} parent=11 // pred_fallthru
          _
        // Predicated region
        $region41: #{tpu_custom_call.1} parent=11 // pred_check
          %p412 = pneg %p245
        $region42: #{tpu_custom_call.1} parent=11 // pred_check_branch
          %414 = sbr.rel (%p412) target = $region44
        $region43: #{tpu_custom_call.1} parent=11 // pred_region
          _
        $region44: #{tpu_custom_call.1} parent=11 // pred_fallthru
          _
        // Predicated region
        $region45: #{tpu_custom_call.1} parent=11 // pred_check
          %p415 = pneg %p266
        $region46: #{tpu_custom_call.1} parent=11 // pred_check_branch
          %417 = sbr.rel (%p415) target = $region48
        $region47: #{tpu_custom_call.1} parent=11 // pred_region
          _
        $region48: #{tpu_custom_call.1} parent=11 // pred_fallthru
          _
        // Predicated region
        $region49: #{tpu_custom_call.1} parent=11 // pred_check
          %p418 = pneg %p287
        $region50: #{tpu_custom_call.1} parent=11 // pred_check_branch
          %420 = sbr.rel (%p418) target = $region52
        $region51: #{tpu_custom_call.1} parent=11 // pred_region
          _
        $region52: #{tpu_custom_call.1} parent=11 // pred_fallthru
          _
        // Predicated region
        $region53: #{tpu_custom_call.1} parent=11 // pred_check
          %p421 = pneg %p308
        $region54: #{tpu_custom_call.1} parent=11 // pred_check_branch
          %423 = sbr.rel (%p421) target = $region56
        $region55: #{tpu_custom_call.1} parent=11 // pred_region
          _
        $region56: #{tpu_custom_call.1} parent=11 // pred_fallthru
          _
        // Predicated region
        $region57: #{tpu_custom_call.1} parent=11 // pred_check
          %p424 = pneg %p329
        $region58: #{tpu_custom_call.1} parent=11 // pred_check_branch
          %426 = sbr.rel (%p424) target = $region60
        $region59: #{tpu_custom_call.1} parent=11 // pred_region
          _
        $region60: #{tpu_custom_call.1} parent=11 // pred_fallthru
          _
        // Predicated region
        $region61: #{tpu_custom_call.1} parent=11 // pred_check
          %p427 = pneg %p350
        $region62: #{tpu_custom_call.1} parent=11 // pred_check_branch
          %429 = sbr.rel (%p427) target = $region64
        $region63: #{tpu_custom_call.1} parent=11 // pred_region
          _
        $region64: #{tpu_custom_call.1} parent=11 // pred_fallthru
          _
      $region12: #{tpu_custom_call.1} parent=5 // pred_fallthru
        _
      %p430 = scmp.lt.s32.totalorder %s25, 2
      // Predicated region
      $region65: #{tpu_custom_call.1} parent=5 // pred_check
        %p431 = pneg %p430
      $region66: #{tpu_custom_call.1} parent=5 // pred_check_branch
        %433 = sbr.rel (%p431) target = $region68
      $region67: #{tpu_custom_call.1} parent=5 // pred_region
        // Predicated region
        $region69: #{tpu_custom_call.1} parent=67 // pred_check
          %p434 = pneg %p45
        $region70: #{tpu_custom_call.1} parent=67 // pred_check_branch
          %436 = sbr.rel (%p434) target = $region72
        $region71: #{tpu_custom_call.1} parent=67 // pred_region
          %p437 = scmp.lt.s32.totalorder %s25, 1
          %s438 = scalar_select %p437, %s25, 1
          %s439 = smul.addr %s438, 2
          %s440 = smul.addr %s439, 8
          %s441 = scalar_lea.vmem %s0, %s440
        $region72: #{tpu_custom_call.1} parent=67 // pred_fallthru
          _
        // Predicated region
        $region73: #{tpu_custom_call.1} parent=67 // pred_check
          %p442 = pneg %p71
        $region74: #{tpu_custom_call.1} parent=67 // pred_check_branch
          %444 = sbr.rel (%p442) target = $region76
        $region75: #{tpu_custom_call.1} parent=67 // pred_region
          %p445 = scmp.lt.s32.totalorder %s25, 1
          %s446 = scalar_select %p445, %s25, 1
          %s447 = scalar_lea.vmem %s1, %s446
        $region76: #{tpu_custom_call.1} parent=67 // pred_fallthru
          _
      $region68: #{tpu_custom_call.1} parent=5 // pred_fallthru
        _
      %p448 = scmp.le.s32.totalorder 1, %s25
      %p449 = scmp.lt.s32.totalorder %s25, 3
      %p450 = pnand %p448, %p449
      %p451 = pneg %p450
      // Predicated region
      $region77: #{tpu_custom_call.1} parent=5 // pred_check
        _
      $region78: #{tpu_custom_call.1} parent=5 // pred_check_branch
        %453 = sbr.rel (%p450) target = $region80
      $region79: #{tpu_custom_call.1} parent=5 // pred_region
        %s454 = ssub.s32 %s25, 1
        %p455 = scmp.lt.s32.totalorder %s30, 1
        %s456 = scalar_select %p455, %s30, 1
        %s457 = smul.addr %s456, 2
        %s458 = smul.addr %s457, 8
        %s459 = scalar_lea.vmem %s0, %s458
        %p460 = pneg %p51
        %p461 = pneg %p48
        %p462 = scmp.lt.s32.totalorder %s30, 1
        %s463 = scalar_select %p462, %s30, 1
        %s464 = scalar_lea.vmem %s1, %s463
        %p465 = pneg %p77
        %p466 = pneg %p74
        %p467 = pneg %p98
        %p468 = pneg %p95
        %p469 = pneg %p119
        %p470 = pneg %p116
        %p471 = pneg %p140
        %p472 = pneg %p137
        %p473 = pneg %p161
        %p474 = pneg %p158
        %p475 = pneg %p182
        %p476 = pneg %p179
        %p477 = pneg %p203
        %p478 = pneg %p200
        %p479 = pneg %p224
        %p480 = pneg %p221
        %p481 = pneg %p245
        %p482 = pneg %p242
        %p483 = pneg %p266
        %p484 = pneg %p263
        %p485 = pneg %p287
        %p486 = pneg %p284
        %p487 = pneg %p308
        %p488 = pneg %p305
        %p489 = pneg %p329
        %p490 = pneg %p326
        %p491 = pneg %p350
        %p492 = pneg %p347
        %p493 = pneg %p376
        %p494 = pneg %p373
        %s495 = sand.u32 %s363, 1
        %s496 = scalar_lea.sflag [#allocation4], %s495
        %s497 = sand.u32 %s363, 1
        %s498 = scalar_lea.vmem [#allocation3], %s497
        %p499 = scmp.lt.s32.totalorder %s30, 1
        %s500 = scalar_select %p499, %s30, 1
        %s501 = smul.addr %s500, 2
        %s502 = smul.addr %s501, 8
        %s503 = scalar_lea.vmem %s0, %s502
        %p504 = scmp.lt.s32.totalorder %s30, 1
        %s505 = scalar_select %p504, %s30, 1
        %s506 = scalar_lea.vmem %s1, %s505
        %v508 = vld [vmem:[%s2] sm:$0xff]
        %v509 = vld [vmem:[%s2 + $0x8] sm:$0xff]
        %v510 = vld [vmem:[%s2 + $0x10] sm:$0x1]
        %v511 = vld [vmem:[%s2 + $0x18] sm:$0x1]
        %v512 = vld [vmem:[%s503] sm:$0xff]
        %v513 = vld [vmem:[%s503 + $0x8] sm:$0xff]
        %v514 = vmax.f32 %v512, 0.0
        %v515 = vmax.f32 %v513, 0.0
        %516 = vrot.lane.b32.xlu0 %v514, 17
        %v517 = vpop.permute.xlu0 %516
        %518 = vrot.lane.b32.xlu0 %v515, 17
        %v519 = vpop.permute.xlu0 %518
        %v520 = vlaneseq
        %v521 = vand.u32 %v520, 127
        %vm522 = vcmp.lt.s32.totalorder %v521, 17
        %v523 = vsel %vm522, %v517, %v519
        %v524 = vsel %vm522, %v519, %v517
        %v525 = vlaneseq
        %v526 = vshrl.u32 %v525, 7
        %v527 = vsub.s32 0, %v526
        %v528 = vrot.slane %v508, %v527
        %v529 = vlaneseq
        %v530 = vshrl.u32 %v529, 7
        %v531 = vsub.s32 0, %v530
        %v532 = vrot.slane %v509, %v531
        %v533 = vmul.f32 %v524, %v528
        %v534 = vmul.f32 %v523, %v532
        %535 = vrot.lane.b32.xlu0 %v514, 16
        %v536 = vpop.permute.xlu0 %535
        %537 = vrot.lane.b32.xlu0 %v515, 16
        %v538 = vpop.permute.xlu0 %537
        %vm539 = vcmp.lt.s32.totalorder %v521, 16
        %v540 = vsel %vm539, %v536, %v538
        %v541 = vsel %vm539, %v538, %v536
        %v542 = vlaneseq
        %v543 = vshrl.u32 %v542, 7
        %v544 = vsub.s32 1, %v543
        %v545 = vrot.slane %v508, %v544
        %v546 = vlaneseq
        %v547 = vshrl.u32 %v546, 7
        %v548 = vsub.s32 1, %v547
        %v549 = vrot.slane %v509, %v548
        %v550 = vmul.f32 %v541, %v545
        %v551 = vmul.f32 %v540, %v549
        %552 = vrot.lane.b32.xlu0 %v514, 15
        %v553 = vpop.permute.xlu0 %552
        %554 = vrot.lane.b32.xlu0 %v515, 15
        %v555 = vpop.permute.xlu0 %554
        %vm556 = vcmp.lt.s32.totalorder %v521, 15
        %v557 = vsel %vm556, %v553, %v555
        %v558 = vsel %vm556, %v555, %v553
        %v559 = vlaneseq
        %v560 = vshrl.u32 %v559, 7
        %v561 = vsub.s32 2, %v560
        %v562 = vrot.slane %v508, %v561
        %v563 = vlaneseq
        %v564 = vshrl.u32 %v563, 7
        %v565 = vsub.s32 2, %v564
        %v566 = vrot.slane %v509, %v565
        %v567 = vmul.f32 %v558, %v562
        %v568 = vmul.f32 %v557, %v566
        %569 = vrot.lane.b32.xlu0 %v514, 1
        %v570 = vpop.permute.xlu0 %569
        %571 = vrot.lane.b32.xlu0 %v515, 1
        %v572 = vpop.permute.xlu0 %571
        %vm573 = vcmp.lt.s32.totalorder %v521, 1
        %v574 = vsel %vm573, %v570, %v572
        %v575 = vsel %vm573, %v572, %v570
        %v576 = vlaneseq
        %v577 = vshrl.u32 %v576, 7
        %v578 = vsub.s32 3, %v577
        %v579 = vrot.slane %v508, %v578
        %v580 = vlaneseq
        %v581 = vshrl.u32 %v580, 7
        %v582 = vsub.s32 3, %v581
        %v583 = vrot.slane %v509, %v582
        %v584 = vmul.f32 %v575, %v579
        %v585 = vmul.f32 %v574, %v583
        %586 = vrot.lane.b32.xlu0 %v514, 127
        %v587 = vpop.permute.xlu0 %586
        %588 = vrot.lane.b32.xlu0 %v515, 127
        %v589 = vpop.permute.xlu0 %588
        %vm590 = vcmp.lt.s32.totalorder %v521, 127
        %v591 = vsel %vm590, %v587, %v589
        %v592 = vsel %vm590, %v589, %v587
        %v593 = vlaneseq
        %v594 = vshrl.u32 %v593, 7
        %v595 = vsub.s32 5, %v594
        %v596 = vrot.slane %v508, %v595
        %v597 = vlaneseq
        %v598 = vshrl.u32 %v597, 7
        %v599 = vsub.s32 5, %v598
        %v600 = vrot.slane %v509, %v599
        %v601 = vmul.f32 %v591, %v596
        %v602 = vmul.f32 %v592, %v600
        %603 = vrot.lane.b32.xlu0 %v514, 113
        %v604 = vpop.permute.xlu0 %603
        %605 = vrot.lane.b32.xlu0 %v515, 113
        %v606 = vpop.permute.xlu0 %605
        %vm607 = vcmp.lt.s32.totalorder %v521, 113
        %v608 = vsel %vm607, %v604, %v606
        %v609 = vsel %vm607, %v606, %v604
        %v610 = vlaneseq
        %v611 = vshrl.u32 %v610, 7
        %v612 = vsub.s32 6, %v611
        %v613 = vrot.slane %v508, %v612
        %v614 = vlaneseq
        %v615 = vshrl.u32 %v614, 7
        %v616 = vsub.s32 6, %v615
        %v617 = vrot.slane %v509, %v616
        %v618 = vmul.f32 %v608, %v613
        %v619 = vmul.f32 %v609, %v617
        %620 = vrot.lane.b32.xlu0 %v514, 112
        %v621 = vpop.permute.xlu0 %620
        %622 = vrot.lane.b32.xlu0 %v515, 112
        %v623 = vpop.permute.xlu0 %622
        %vm624 = vcmp.lt.s32.totalorder %v521, 112
        %v625 = vsel %vm624, %v621, %v623
        %v626 = vsel %vm624, %v623, %v621
        %v627 = vlaneseq
        %v628 = vshrl.u32 %v627, 7
        %v629 = vsub.s32 7, %v628
        %v630 = vrot.slane %v508, %v629
        %v631 = vlaneseq
        %v632 = vshrl.u32 %v631, 7
        %v633 = vsub.s32 7, %v632
        %v634 = vrot.slane %v509, %v633
        %v635 = vmul.f32 %v625, %v630
        %v636 = vmul.f32 %v626, %v634
        %637 = vrot.lane.b32.xlu0 %v514, 111
        %v638 = vpop.permute.xlu0 %637
        %639 = vrot.lane.b32.xlu0 %v515, 111
        %v640 = vpop.permute.xlu0 %639
        %vm641 = vcmp.lt.s32.totalorder %v521, 111
        %v642 = vsel %vm641, %v638, %v640
        %v643 = vsel %vm641, %v640, %v638
        %v644 = vlaneseq
        %v645 = vshrl.u32 %v644, 7
        %v646 = vsub.s32 0, %v645
        %v647 = vrot.slane %v510, %v646
        %v648 = vlaneseq
        %v649 = vshrl.u32 %v648, 7
        %v650 = vsub.s32 0, %v649
        %v651 = vrot.slane %v511, %v650
        %v652 = vmul.f32 %v642, %v647
        %v653 = vmul.f32 %v643, %v651
        %v654 = vld [vmem:[%s3] sm:$0xf]
        %v655 = vpack.c.bf16 %v550, %v533
        %v656 = vpack.c.bf16 %v551, %v534
        %v657 = vpack.c.bf16 %v584, %v567
        %v658 = vpack.c.bf16 %v585, %v568
        %v659 = vpack.c.bf16 %v601, %v514
        %v660 = vpack.c.bf16 %v602, %v515
        %v661 = vpack.c.bf16 %v635, %v618
        %v662 = vpack.c.bf16 %v636, %v619
        %v663 = vpack.c.bf16 %v652, %v652
        %v664 = vpack.c.bf16 %v653, %v653
        %v665 = vld [vmem:[%s4] sm:$0xff]
        %667 = vset.pattern.permute.xlu0 0
        %668 = vperm.xlu0 %667, %v665
        %v669 = vpop.permute.xlu0 %668
        %vm671 = vcmask 588800
        %v673 = vsel %vm671, %v654, 0
        %vm675 = vcmask 1043456
        %v677 = vsel %vm675, %v663, 0
        %v680 = vsel %vm675, %v664, 0
        %682 = vmatprep.subr.bf16.mxu0 0
        %683 = vmatpush1.bf16.msra.mxu0 0
        %684 = vmatprep.subr.bf16.mxu0 0
        %685 = vmatpush1.bf16.msra.mxu0 0
        %686 = vmatprep.subr.bf16.mxu0 0
        %687 = vmatpush1.bf16.msra.mxu0 0
        %688 = vmatprep.subr.bf16.mxu0 %v680
        %689 = vmatpush1.bf16.msra.mxu0 %v677
        %690 = vmatprep.subr.bf16.mxu0 %v662
        %691 = vmatpush1.bf16.msra.mxu0 %v661
        %692 = vmatprep.subr.bf16.mxu0 %v660
        %693 = vmatpush1.bf16.msra.mxu0 %v659
        %694 = vmatprep.subr.bf16.mxu0 %v658
        %695 = vmatpush1.bf16.msra.mxu0 %v657
        %696 = vmatprep.subr.bf16.mxu0 %v656
        %697 = vmatpush1.bf16.msra.mxu0 %v655
        %698 = vmatprep.subr.bf16.mxu0 0
        %699 = vmatpush2.bf16.msra.mxu0 0
        %700 = vmatprep.subr.bf16.mxu0 0
        %701 = vmatpush2.bf16.msra.mxu0 0
        %702 = vmatprep.subr.bf16.mxu0 0
        %703 = vmatpush2.bf16.msra.mxu0 0
        %704 = vmatprep.subr.bf16.mxu0 0
        %705 = vmatpush2.bf16.msra.mxu0 0
        %706 = vmatprep.subr.bf16.mxu0 0
        %707 = vmatpush2.bf16.msra.mxu0 0
        %708 = vmatprep.subr.bf16.mxu0 0
        %709 = vmatpush2.bf16.msra.mxu0 0
        %710 = vmatprep.subr.bf16.mxu0 0
        %711 = vmatpush2.bf16.msra.mxu0 0
        %712 = vmatprep.subr.bf16.mxu0 0
        %713 = vmatpush2.bf16.msra.mxu0 0
        %714 = vmatprep.mubr.bf16.mxu0 0
        %715 = vmatmul.mubr.bf16.gmra.mxu0 %v673
        %v716 = vpop.f32.mrf.mxu0
        %v717 = vadd.f32 %v669, %v716
        %v718 = vpop.f32.mrf.mxu0
        %v719 = vadd.f32 %v669, %v718
        %v720 = vpop.f32.mrf.mxu0
        %v721 = vpop.f32.mrf.mxu0
        %722 = vdwg.mxu0
        %723 = vrot.lane.b32.xlu0 %v717, 17
        %v724 = vpop.permute.xlu0 %723
        %725 = vrot.lane.b32.xlu0 %v719, 17
        %v726 = vpop.permute.xlu0 %725
        %v727 = vsel %vm522, %v724, %v726
        %v728 = vsel %vm522, %v726, %v724
        %v729 = vmul.f32 %v728, %v528
        %v730 = vmul.f32 %v727, %v532
        %731 = vrot.lane.b32.xlu0 %v717, 16
        %v732 = vpop.permute.xlu0 %731
        %733 = vrot.lane.b32.xlu0 %v719, 16
        %v734 = vpop.permute.xlu0 %733
        %v735 = vsel %vm539, %v732, %v734
        %v736 = vsel %vm539, %v734, %v732
        %v737 = vmul.f32 %v736, %v545
        %v738 = vmul.f32 %v735, %v549
        %739 = vrot.lane.b32.xlu0 %v717, 15
        %v740 = vpop.permute.xlu0 %739
        %741 = vrot.lane.b32.xlu0 %v719, 15
        %v742 = vpop.permute.xlu0 %741
        %v743 = vsel %vm556, %v740, %v742
        %v744 = vsel %vm556, %v742, %v740
        %v745 = vmul.f32 %v744, %v562
        %v746 = vmul.f32 %v743, %v566
        %747 = vrot.lane.b32.xlu0 %v717, 1
        %v748 = vpop.permute.xlu0 %747
        %749 = vrot.lane.b32.xlu0 %v719, 1
        %v750 = vpop.permute.xlu0 %749
        %v751 = vsel %vm573, %v748, %v750
        %v752 = vsel %vm573, %v750, %v748
        %v753 = vmul.f32 %v752, %v579
        %v754 = vmul.f32 %v751, %v583
        %755 = vrot.lane.b32.xlu0 %v717, 127
        %v756 = vpop.permute.xlu0 %755
        %757 = vrot.lane.b32.xlu0 %v719, 127
        %v758 = vpop.permute.xlu0 %757
        %v759 = vsel %vm590, %v756, %v758
        %v760 = vsel %vm590, %v758, %v756
        %v761 = vmul.f32 %v759, %v596
        %v762 = vmul.f32 %v760, %v600
        %763 = vrot.lane.b32.xlu0 %v717, 113
        %v764 = vpop.permute.xlu0 %763
        %765 = vrot.lane.b32.xlu0 %v719, 113
        %v766 = vpop.permute.xlu0 %765
        %v767 = vsel %vm607, %v764, %v766
        %v768 = vsel %vm607, %v766, %v764
        %v769 = vmul.f32 %v767, %v613
        %v770 = vmul.f32 %v768, %v617
        %771 = vrot.lane.b32.xlu0 %v717, 112
        %v772 = vpop.permute.xlu0 %771
        %773 = vrot.lane.b32.xlu0 %v719, 112
        %v774 = vpop.permute.xlu0 %773
        %v775 = vsel %vm624, %v772, %v774
        %v776 = vsel %vm624, %v774, %v772
        %v777 = vmul.f32 %v775, %v630
        %v778 = vmul.f32 %v776, %v634
        %779 = vrot.lane.b32.xlu0 %v717, 111
        %v780 = vpop.permute.xlu0 %779
        %781 = vrot.lane.b32.xlu0 %v719, 111
        %v782 = vpop.permute.xlu0 %781
        %v783 = vsel %vm641, %v780, %v782
        %v784 = vsel %vm641, %v782, %v780
        %v785 = vmul.f32 %v783, %v647
        %v786 = vmul.f32 %v784, %v651
        %v787 = vld [vmem:[%s5] sm:$0xf]
        %v788 = vpack.c.bf16 %v737, %v729
        %v789 = vpack.c.bf16 %v738, %v730
        %v790 = vpack.c.bf16 %v753, %v745
        %v791 = vpack.c.bf16 %v754, %v746
        %v792 = vpack.c.bf16 %v761, %v717
        %v793 = vpack.c.bf16 %v762, %v719
        %v794 = vpack.c.bf16 %v777, %v769
        %v795 = vpack.c.bf16 %v778, %v770
        %v796 = vpack.c.bf16 %v785, %v785
        %v797 = vpack.c.bf16 %v786, %v786
        %v798 = vld [vmem:[%s6] sm:$0xff]
        %800 = vset.pattern.permute.xlu0 0
        %801 = vperm.xlu0 %800, %v798
        %v802 = vpop.permute.xlu0 %801
        %v805 = vsel %vm671, %v787, 0
        %v808 = vsel %vm675, %v796, 0
        %v811 = vsel %vm675, %v797, 0
        %813 = vmatprep.subr.bf16.mxu0 0
        %814 = vmatpush1.bf16.msra.mxu0 0
        %815 = vmatprep.subr.bf16.mxu0 0
        %816 = vmatpush1.bf16.msra.mxu0 0
        %817 = vmatprep.subr.bf16.mxu0 0
        %818 = vmatpush1.bf16.msra.mxu0 0
        %819 = vmatprep.subr.bf16.mxu0 %v811
        %820 = vmatpush1.bf16.msra.mxu0 %v808
        %821 = vmatprep.subr.bf16.mxu0 %v795
        %822 = vmatpush1.bf16.msra.mxu0 %v794
        %823 = vmatprep.subr.bf16.mxu0 %v793
        %824 = vmatpush1.bf16.msra.mxu0 %v792
        %825 = vmatprep.subr.bf16.mxu0 %v791
        %826 = vmatpush1.bf16.msra.mxu0 %v790
        %827 = vmatprep.subr.bf16.mxu0 %v789
        %828 = vmatpush1.bf16.msra.mxu0 %v788
        %829 = vmatprep.subr.bf16.mxu0 0
        %830 = vmatpush2.bf16.msra.mxu0 0
        %831 = vmatprep.subr.bf16.mxu0 0
        %832 = vmatpush2.bf16.msra.mxu0 0
        %833 = vmatprep.subr.bf16.mxu0 0
        %834 = vmatpush2.bf16.msra.mxu0 0
        %835 = vmatprep.subr.bf16.mxu0 0
        %836 = vmatpush2.bf16.msra.mxu0 0
        %837 = vmatprep.subr.bf16.mxu0 0
        %838 = vmatpush2.bf16.msra.mxu0 0
        %839 = vmatprep.subr.bf16.mxu0 0
        %840 = vmatpush2.bf16.msra.mxu0 0
        %841 = vmatprep.subr.bf16.mxu0 0
        %842 = vmatpush2.bf16.msra.mxu0 0
        %843 = vmatprep.subr.bf16.mxu0 0
        %844 = vmatpush2.bf16.msra.mxu0 0
        %845 = vmatprep.mubr.bf16.mxu0 0
        %846 = vmatmul.mubr.bf16.gmra.mxu0 %v805
        %v847 = vpop.f32.mrf.mxu0
        %v848 = vadd.f32 %v802, %v847
        %v849 = vpop.f32.mrf.mxu0
        %v850 = vadd.f32 %v802, %v849
        %v851 = vpop.f32.mrf.mxu0
        %v852 = vpop.f32.mrf.mxu0
        %853 = vdwg.mxu0
        %854 = vrot.lane.b32.xlu0 %v848, 17
        %v855 = vpop.permute.xlu0 %854
        %856 = vrot.lane.b32.xlu0 %v850, 17
        %v857 = vpop.permute.xlu0 %856
        %v858 = vsel %vm522, %v855, %v857
        %v859 = vsel %vm522, %v857, %v855
        %v860 = vmul.f32 %v859, %v528
        %v861 = vmul.f32 %v858, %v532
        %862 = vrot.lane.b32.xlu0 %v848, 16
        %v863 = vpop.permute.xlu0 %862
        %864 = vrot.lane.b32.xlu0 %v850, 16
        %v865 = vpop.permute.xlu0 %864
        %v866 = vsel %vm539, %v863, %v865
        %v867 = vsel %vm539, %v865, %v863
        %v868 = vmul.f32 %v867, %v545
        %v869 = vmul.f32 %v866, %v549
        %870 = vrot.lane.b32.xlu0 %v848, 15
        %v871 = vpop.permute.xlu0 %870
        %872 = vrot.lane.b32.xlu0 %v850, 15
        %v873 = vpop.permute.xlu0 %872
        %v874 = vsel %vm556, %v871, %v873
        %v875 = vsel %vm556, %v873, %v871
        %v876 = vmul.f32 %v875, %v562
        %v877 = vmul.f32 %v874, %v566
        %878 = vrot.lane.b32.xlu0 %v848, 1
        %v879 = vpop.permute.xlu0 %878
        %880 = vrot.lane.b32.xlu0 %v850, 1
        %v881 = vpop.permute.xlu0 %880
        %v882 = vsel %vm573, %v879, %v881
        %v883 = vsel %vm573, %v881, %v879
        %v884 = vmul.f32 %v883, %v579
        %v885 = vmul.f32 %v882, %v583
        %886 = vrot.lane.b32.xlu0 %v848, 127
        %v887 = vpop.permute.xlu0 %886
        %888 = vrot.lane.b32.xlu0 %v850, 127
        %v889 = vpop.permute.xlu0 %888
        %v890 = vsel %vm590, %v887, %v889
        %v891 = vsel %vm590, %v889, %v887
        %v892 = vmul.f32 %v890, %v596
        %v893 = vmul.f32 %v891, %v600
        %894 = vrot.lane.b32.xlu0 %v848, 113
        %v895 = vpop.permute.xlu0 %894
        %896 = vrot.lane.b32.xlu0 %v850, 113
        %v897 = vpop.permute.xlu0 %896
        %v898 = vsel %vm607, %v895, %v897
        %v899 = vsel %vm607, %v897, %v895
        %v900 = vmul.f32 %v898, %v613
        %v901 = vmul.f32 %v899, %v617
        %902 = vrot.lane.b32.xlu0 %v848, 112
        %v903 = vpop.permute.xlu0 %902
        %904 = vrot.lane.b32.xlu0 %v850, 112
        %v905 = vpop.permute.xlu0 %904
        %v906 = vsel %vm624, %v903, %v905
        %v907 = vsel %vm624, %v905, %v903
        %v908 = vmul.f32 %v906, %v630
        %v909 = vmul.f32 %v907, %v634
        %910 = vrot.lane.b32.xlu0 %v848, 111
        %v911 = vpop.permute.xlu0 %910
        %912 = vrot.lane.b32.xlu0 %v850, 111
        %v913 = vpop.permute.xlu0 %912
        %v914 = vsel %vm641, %v911, %v913
        %v915 = vsel %vm641, %v913, %v911
        %v916 = vmul.f32 %v914, %v647
        %v917 = vmul.f32 %v915, %v651
        %v918 = vld [vmem:[%s7] sm:$0xf]
        %v919 = vpack.c.bf16 %v868, %v860
        %v920 = vpack.c.bf16 %v869, %v861
        %v921 = vpack.c.bf16 %v884, %v876
        %v922 = vpack.c.bf16 %v885, %v877
        %v923 = vpack.c.bf16 %v892, %v848
        %v924 = vpack.c.bf16 %v893, %v850
        %v925 = vpack.c.bf16 %v908, %v900
        %v926 = vpack.c.bf16 %v909, %v901
        %v927 = vpack.c.bf16 %v916, %v916
        %v928 = vpack.c.bf16 %v917, %v917
        %v929 = vld [vmem:[%s8] sm:$0xff]
        %931 = vset.pattern.permute.xlu0 0
        %932 = vperm.xlu0 %931, %v929
        %v933 = vpop.permute.xlu0 %932
        %v936 = vsel %vm671, %v918, 0
        %v939 = vsel %vm675, %v927, 0
        %v942 = vsel %vm675, %v928, 0
        %944 = vmatprep.subr.bf16.mxu0 0
        %945 = vmatpush1.bf16.msra.mxu0 0
        %946 = vmatprep.subr.bf16.mxu0 0
        %947 = vmatpush1.bf16.msra.mxu0 0
        %948 = vmatprep.subr.bf16.mxu0 0
        %949 = vmatpush1.bf16.msra.mxu0 0
        %950 = vmatprep.subr.bf16.mxu0 %v942
        %951 = vmatpush1.bf16.msra.mxu0 %v939
        %952 = vmatprep.subr.bf16.mxu0 %v926
        %953 = vmatpush1.bf16.msra.mxu0 %v925
        %954 = vmatprep.subr.bf16.mxu0 %v924
        %955 = vmatpush1.bf16.msra.mxu0 %v923
        %956 = vmatprep.subr.bf16.mxu0 %v922
        %957 = vmatpush1.bf16.msra.mxu0 %v921
        %958 = vmatprep.subr.bf16.mxu0 %v920
        %959 = vmatpush1.bf16.msra.mxu0 %v919
        %960 = vmatprep.subr.bf16.mxu0 0
        %961 = vmatpush2.bf16.msra.mxu0 0
        %962 = vmatprep.subr.bf16.mxu0 0
        %963 = vmatpush2.bf16.msra.mxu0 0
        %964 = vmatprep.subr.bf16.mxu0 0
        %965 = vmatpush2.bf16.msra.mxu0 0
        %966 = vmatprep.subr.bf16.mxu0 0
        %967 = vmatpush2.bf16.msra.mxu0 0
        %968 = vmatprep.subr.bf16.mxu0 0
        %969 = vmatpush2.bf16.msra.mxu0 0
        %970 = vmatprep.subr.bf16.mxu0 0
        %971 = vmatpush2.bf16.msra.mxu0 0
        %972 = vmatprep.subr.bf16.mxu0 0
        %973 = vmatpush2.bf16.msra.mxu0 0
        %974 = vmatprep.subr.bf16.mxu0 0
        %975 = vmatpush2.bf16.msra.mxu0 0
        %976 = vmatprep.mubr.bf16.mxu0 0
        %977 = vmatmul.mubr.bf16.gmra.mxu0 %v936
        %v978 = vpop.f32.mrf.mxu0
        %v979 = vadd.f32 %v933, %v978
        %v980 = vpop.f32.mrf.mxu0
        %v981 = vadd.f32 %v933, %v980
        %v982 = vpop.f32.mrf.mxu0
        %v983 = vpop.f32.mrf.mxu0
        %984 = vdwg.mxu0
        %985 = vrot.lane.b32.xlu0 %v979, 127
        %v986 = vpop.permute.xlu0 %985
        %987 = vrot.lane.b32.xlu0 %v981, 127
        %v988 = vpop.permute.xlu0 %987
        %v989 = vsel %vm590, %v986, %v988
        %v990 = vsel %vm590, %v988, %v986
        %v991 = vmax.f32 %v979, %v989
        %v992 = vmax.f32 %v981, %v990
        %993 = vrot.lane.b32.xlu0 %v979, 126
        %v994 = vpop.permute.xlu0 %993
        %995 = vrot.lane.b32.xlu0 %v981, 126
        %v996 = vpop.permute.xlu0 %995
        %vm997 = vcmp.lt.s32.totalorder %v521, 126
        %v998 = vsel %vm997, %v994, %v996
        %v999 = vsel %vm997, %v996, %v994
        %v1000 = vmax.f32 %v991, %v998
        %v1001 = vmax.f32 %v992, %v999
        %1002 = vrot.lane.b32.xlu0 %v979, 125
        %v1003 = vpop.permute.xlu0 %1002
        %1004 = vrot.lane.b32.xlu0 %v981, 125
        %v1005 = vpop.permute.xlu0 %1004
        %vm1006 = vcmp.lt.s32.totalorder %v521, 125
        %v1007 = vsel %vm1006, %v1003, %v1005
        %v1008 = vsel %vm1006, %v1005, %v1003
        %v1009 = vmax.f32 %v1000, %v1007
        %v1010 = vmax.f32 %v1001, %v1008
        %1011 = vrot.lane.b32.xlu0 %v1009, 112
        %v1012 = vpop.permute.xlu0 %1011
        %1013 = vrot.lane.b32.xlu0 %v1010, 112
        %v1014 = vpop.permute.xlu0 %1013
        %v1015 = vsel %vm624, %v1012, %v1014
        %v1016 = vsel %vm624, %v1014, %v1012
        %v1017 = vmax.f32 %v1009, %v1015
        %v1018 = vmax.f32 %v1010, %v1016
        %1019 = vrot.lane.b32.xlu0 %v1009, 96
        %v1020 = vpop.permute.xlu0 %1019
        %1021 = vrot.lane.b32.xlu0 %v1010, 96
        %v1022 = vpop.permute.xlu0 %1021
        %vm1023 = vcmp.lt.s32.totalorder %v521, 96
        %v1024 = vsel %vm1023, %v1020, %v1022
        %v1025 = vsel %vm1023, %v1022, %v1020
        %v1026 = vmax.f32 %v1017, %v1024
        %v1027 = vmax.f32 %v1018, %v1025
        %1028 = vrot.lane.b32.xlu0 %v1009, 80
        %v1029 = vpop.permute.xlu0 %1028
        %1030 = vrot.lane.b32.xlu0 %v1010, 80
        %v1031 = vpop.permute.xlu0 %1030
        %vm1032 = vcmp.lt.s32.totalorder %v521, 80
        %v1033 = vsel %vm1032, %v1029, %v1031
        %v1034 = vsel %vm1032, %v1031, %v1029
        %v1035 = vmax.f32 %v1026, %v1033
        %v1036 = vmax.f32 %v1027, %v1034
        %s1037 = sld [smem:[#allocation2]]
        %v1038 = vld [vmem:[%s10] sm:$0xf]
        %v1039 = vld [vmem:[%s10 + $0x4] sm:$0xf]
        %v1040 = vld [vmem:[%s10 + $0x8] sm:$0xf]
        %v1041 = vld [vmem:[%s10 + $0xc] sm:$0xf]
        %v1042 = vld [vmem:[%s10 + $0x10] sm:$0xf]
        %v1043 = vld [vmem:[%s10 + $0x14] sm:$0xf]
        %v1044 = vld [vmem:[%s10 + $0x18] sm:$0xf]
        %v1045 = vld [vmem:[%s10 + $0x1c] sm:$0xf]
        %v1046 = vld [vmem:[%s10 + $0x20] sm:$0xf]
        %v1047 = vld [vmem:[%s10 + $0x24] sm:$0xf]
        %v1048 = vld [vmem:[%s10 + $0x28] sm:$0xf]
        %v1049 = vld [vmem:[%s10 + $0x2c] sm:$0xf]
        %v1050 = vld [vmem:[%s10 + $0x30] sm:$0xf]
        %v1051 = vld [vmem:[%s10 + $0x34] sm:$0xf]
        %v1052 = vld [vmem:[%s10 + $0x38] sm:$0xf]
        %v1053 = vld [vmem:[%s10 + $0x3c] sm:$0xf]
        %v1054 = vld [vmem:[%s10 + $0x40] sm:$0xf]
        %v1055 = vld [vmem:[%s10 + $0x44] sm:$0xf]
        %v1056 = vld [vmem:[%s10 + $0x48] sm:$0xf]
        %v1057 = vld [vmem:[%s10 + $0x4c] sm:$0xf]
        %v1058 = vld [vmem:[%s10 + $0x50] sm:$0xf]
        %v1059 = vld [vmem:[%s10 + $0x54] sm:$0xf]
        %v1060 = vld [vmem:[%s10 + $0x58] sm:$0xf]
        %v1061 = vld [vmem:[%s10 + $0x5c] sm:$0xf]
        %v1062 = vld [vmem:[%s10 + $0x60] sm:$0xf]
        %v1063 = vld [vmem:[%s10 + $0x64] sm:$0xf]
        %v1064 = vld [vmem:[%s10 + $0x68] sm:$0xf]
        %v1065 = vld [vmem:[%s10 + $0x6c] sm:$0xf]
        %v1066 = vld [vmem:[%s10 + $0x70] sm:$0xf]
        %v1067 = vld [vmem:[%s10 + $0x74] sm:$0xf]
        %v1068 = vld [vmem:[%s10 + $0x78] sm:$0xf]
        %v1069 = vld [vmem:[%s10 + $0x7c] sm:$0xf]
        %v1070 = vld [vmem:[%s11] sm:$0xf]
        %v1071 = vld [vmem:[%s11 + $0x4] sm:$0xf]
        %v1072 = vld [vmem:[%s11 + $0x8] sm:$0xf]
        %v1073 = vld [vmem:[%s11 + $0xc] sm:$0xf]
        %v1074 = vld [vmem:[%s11 + $0x10] sm:$0xf]
        %v1075 = vld [vmem:[%s11 + $0x14] sm:$0xf]
        %v1076 = vld [vmem:[%s11 + $0x18] sm:$0xf]
        %v1077 = vld [vmem:[%s11 + $0x1c] sm:$0xf]
        %v1078 = vld [vmem:[%s11 + $0x20] sm:$0xf]
        %v1079 = vld [vmem:[%s11 + $0x24] sm:$0xf]
        %v1080 = vld [vmem:[%s11 + $0x28] sm:$0xf]
        %v1081 = vld [vmem:[%s11 + $0x2c] sm:$0xf]
        %v1082 = vld [vmem:[%s11 + $0x30] sm:$0xf]
        %v1083 = vld [vmem:[%s11 + $0x34] sm:$0xf]
        %v1084 = vld [vmem:[%s11 + $0x38] sm:$0xf]
        %v1085 = vld [vmem:[%s11 + $0x3c] sm:$0xf]
        %v1086 = vld [vmem:[%s11 + $0x40] sm:$0xf]
        %v1087 = vld [vmem:[%s11 + $0x44] sm:$0xf]
        %v1088 = vld [vmem:[%s11 + $0x48] sm:$0xf]
        %v1089 = vld [vmem:[%s11 + $0x4c] sm:$0xf]
        %v1090 = vld [vmem:[%s11 + $0x50] sm:$0xf]
        %v1091 = vld [vmem:[%s11 + $0x54] sm:$0xf]
        %v1092 = vld [vmem:[%s11 + $0x58] sm:$0xf]
        %v1093 = vld [vmem:[%s11 + $0x5c] sm:$0xf]
        %v1094 = vld [vmem:[%s11 + $0x60] sm:$0xf]
        %v1095 = vld [vmem:[%s11 + $0x64] sm:$0xf]
        %v1096 = vld [vmem:[%s11 + $0x68] sm:$0xf]
        %v1097 = vld [vmem:[%s11 + $0x6c] sm:$0xf]
        %v1098 = vld [vmem:[%s11 + $0x70] sm:$0xf]
        %v1099 = vld [vmem:[%s11 + $0x74] sm:$0xf]
        %v1100 = vld [vmem:[%s11 + $0x78] sm:$0xf]
        %v1101 = vld [vmem:[%s11 + $0x7c] sm:$0xf]
        %v1102 = vpack.c.bf16 %v1035, %v1035
        %v1103 = vpack.c.bf16 %v1036, %v1036
        %v1136 = vunpack.c.l.b16 %v1038
        %v1137 = vunpack.c.l.b16 %v1039
        %v1138 = vunpack.c.l.b16 %v1040
        %v1139 = vunpack.c.l.b16 %v1041
        %v1140 = vunpack.c.l.b16 %v1042
        %v1141 = vunpack.c.l.b16 %v1043
        %v1142 = vunpack.c.l.b16 %v1044
        %v1143 = vunpack.c.l.b16 %v1045
        %v1144 = vunpack.c.l.b16 %v1046
        %v1145 = vunpack.c.l.b16 %v1047
        %v1146 = vunpack.c.l.b16 %v1048
        %v1147 = vunpack.c.l.b16 %v1049
        %v1148 = vunpack.c.l.b16 %v1050
        %v1149 = vunpack.c.l.b16 %v1051
        %v1150 = vunpack.c.l.b16 %v1052
        %v1151 = vunpack.c.l.b16 %v1053
        %v1152 = vunpack.c.l.b16 %v1054
        %v1153 = vunpack.c.l.b16 %v1055
        %v1154 = vunpack.c.l.b16 %v1056
        %v1155 = vunpack.c.l.b16 %v1057
        %v1156 = vunpack.c.l.b16 %v1058
        %v1157 = vunpack.c.l.b16 %v1059
        %v1158 = vunpack.c.l.b16 %v1060
        %v1159 = vunpack.c.l.b16 %v1061
        %v1160 = vunpack.c.l.b16 %v1062
        %v1161 = vunpack.c.l.b16 %v1063
        %v1162 = vunpack.c.l.b16 %v1064
        %v1163 = vunpack.c.l.b16 %v1065
        %v1164 = vunpack.c.l.b16 %v1066
        %v1165 = vunpack.c.l.b16 %v1067
        %v1166 = vunpack.c.l.b16 %v1068
        %v1167 = vunpack.c.l.b16 %v1069
        %v1168 = vpack.c.b16 %v1137, %v1136
        %v1169 = vpack.c.b16 %v1139, %v1138
        %v1170 = vpack.c.b16 %v1141, %v1140
        %v1171 = vpack.c.b16 %v1143, %v1142
        %v1172 = vpack.c.b16 %v1145, %v1144
        %v1173 = vpack.c.b16 %v1147, %v1146
        %v1174 = vpack.c.b16 %v1149, %v1148
        %v1175 = vpack.c.b16 %v1151, %v1150
        %v1176 = vpack.c.b16 %v1153, %v1152
        %v1177 = vpack.c.b16 %v1155, %v1154
        %v1178 = vpack.c.b16 %v1157, %v1156
        %v1179 = vpack.c.b16 %v1159, %v1158
        %v1180 = vpack.c.b16 %v1161, %v1160
        %v1181 = vpack.c.b16 %v1163, %v1162
        %v1182 = vpack.c.b16 %v1165, %v1164
        %v1183 = vpack.c.b16 %v1167, %v1166
        %1200 = vmatprep.subr.bf16.mxu0 0
        %1201 = vmatpush1.bf16.msra.mxu0 %v1175
        %1202 = vmatprep.subr.bf16.mxu0 0
        %1203 = vmatpush1.bf16.msra.mxu0 %v1174
        %1204 = vmatprep.subr.bf16.mxu0 0
        %1205 = vmatpush1.bf16.msra.mxu0 %v1173
        %1206 = vmatprep.subr.bf16.mxu0 0
        %1207 = vmatpush1.bf16.msra.mxu0 %v1172
        %1208 = vmatprep.subr.bf16.mxu0 0
        %1209 = vmatpush1.bf16.msra.mxu0 %v1171
        %1210 = vmatprep.subr.bf16.mxu0 0
        %1211 = vmatpush1.bf16.msra.mxu0 %v1170
        %1212 = vmatprep.subr.bf16.mxu0 0
        %1213 = vmatpush1.bf16.msra.mxu0 %v1169
        %1214 = vmatprep.subr.bf16.mxu0 0
        %1215 = vmatpush1.bf16.msra.mxu0 %v1168
        %1216 = vmatprep.subr.bf16.mxu0 0
        %1217 = vmatpush2.bf16.msra.mxu0 %v1183
        %1218 = vmatprep.subr.bf16.mxu0 0
        %1219 = vmatpush2.bf16.msra.mxu0 %v1182
        %1220 = vmatprep.subr.bf16.mxu0 0
        %1221 = vmatpush2.bf16.msra.mxu0 %v1181
        %1222 = vmatprep.subr.bf16.mxu0 0
        %1223 = vmatpush2.bf16.msra.mxu0 %v1180
        %1224 = vmatprep.subr.bf16.mxu0 0
        %1225 = vmatpush2.bf16.msra.mxu0 %v1179
        %1226 = vmatprep.subr.bf16.mxu0 0
        %1227 = vmatpush2.bf16.msra.mxu0 %v1178
        %1228 = vmatprep.subr.bf16.mxu0 0
        %1229 = vmatpush2.bf16.msra.mxu0 %v1177
        %1230 = vmatprep.subr.bf16.mxu0 0
        %1231 = vmatpush2.bf16.msra.mxu0 %v1176
        %1232 = vmatprep.mubr.bf16.mxu0 %v1103
        %1233 = vmatmul.mubr.bf16.gmra.mxu0 %v1102
        %v1234 = vpop.f32.mrf.mxu0
        %v1235 = vadd.f32 0.0, %v1234
        %v1236 = vpop.f32.mrf.mxu0
        %v1237 = vpop.f32.mrf.mxu0
        %v1238 = vpop.f32.mrf.mxu0
        %1239 = vdwg.mxu0
        %v1240 = vpack.c.bf16 %v979, %v979
        %v1241 = vpack.c.bf16 %v981, %v981
        %v1274 = vunpack.c.l.b16 %v1070
        %v1275 = vunpack.c.l.b16 %v1071
        %v1276 = vunpack.c.l.b16 %v1072
        %v1277 = vunpack.c.l.b16 %v1073
        %v1278 = vunpack.c.l.b16 %v1074
        %v1279 = vunpack.c.l.b16 %v1075
        %v1280 = vunpack.c.l.b16 %v1076
        %v1281 = vunpack.c.l.b16 %v1077
        %v1282 = vunpack.c.l.b16 %v1078
        %v1283 = vunpack.c.l.b16 %v1079
        %v1284 = vunpack.c.l.b16 %v1080
        %v1285 = vunpack.c.l.b16 %v1081
        %v1286 = vunpack.c.l.b16 %v1082
        %v1287 = vunpack.c.l.b16 %v1083
        %v1288 = vunpack.c.l.b16 %v1084
        %v1289 = vunpack.c.l.b16 %v1085
        %v1290 = vunpack.c.l.b16 %v1086
        %v1291 = vunpack.c.l.b16 %v1087
        %v1292 = vunpack.c.l.b16 %v1088
        %v1293 = vunpack.c.l.b16 %v1089
        %v1294 = vunpack.c.l.b16 %v1090
        %v1295 = vunpack.c.l.b16 %v1091
        %v1296 = vunpack.c.l.b16 %v1092
        %v1297 = vunpack.c.l.b16 %v1093
        %v1298 = vunpack.c.l.b16 %v1094
        %v1299 = vunpack.c.l.b16 %v1095
        %v1300 = vunpack.c.l.b16 %v1096
        %v1301 = vunpack.c.l.b16 %v1097
        %v1302 = vunpack.c.l.b16 %v1098
        %v1303 = vunpack.c.l.b16 %v1099
        %v1304 = vunpack.c.l.b16 %v1100
        %v1305 = vunpack.c.l.b16 %v1101
        %v1306 = vpack.c.b16 %v1275, %v1274
        %v1307 = vpack.c.b16 %v1277, %v1276
        %v1308 = vpack.c.b16 %v1279, %v1278
        %v1309 = vpack.c.b16 %v1281, %v1280
        %v1310 = vpack.c.b16 %v1283, %v1282
        %v1311 = vpack.c.b16 %v1285, %v1284
        %v1312 = vpack.c.b16 %v1287, %v1286
        %v1313 = vpack.c.b16 %v1289, %v1288
        %v1314 = vpack.c.b16 %v1291, %v1290
        %v1315 = vpack.c.b16 %v1293, %v1292
        %v1316 = vpack.c.b16 %v1295, %v1294
        %v1317 = vpack.c.b16 %v1297, %v1296
        %v1318 = vpack.c.b16 %v1299, %v1298
        %v1319 = vpack.c.b16 %v1301, %v1300
        %v1320 = vpack.c.b16 %v1303, %v1302
        %v1321 = vpack.c.b16 %v1305, %v1304
        %1338 = vmatprep.subr.bf16.mxu0 0
        %1339 = vmatpush1.bf16.msra.mxu0 %v1313
        %1340 = vmatprep.subr.bf16.mxu0 0
        %1341 = vmatpush1.bf16.msra.mxu0 %v1312
        %1342 = vmatprep.subr.bf16.mxu0 0
        %1343 = vmatpush1.bf16.msra.mxu0 %v1311
        %1344 = vmatprep.subr.bf16.mxu0 0
        %1345 = vmatpush1.bf16.msra.mxu0 %v1310
        %1346 = vmatprep.subr.bf16.mxu0 0
        %1347 = vmatpush1.bf16.msra.mxu0 %v1309
        %1348 = vmatprep.subr.bf16.mxu0 0
        %1349 = vmatpush1.bf16.msra.mxu0 %v1308
        %1350 = vmatprep.subr.bf16.mxu0 0
        %1351 = vmatpush1.bf16.msra.mxu0 %v1307
        %1352 = vmatprep.subr.bf16.mxu0 0
        %1353 = vmatpush1.bf16.msra.mxu0 %v1306
        %1354 = vmatprep.subr.bf16.mxu0 0
        %1355 = vmatpush2.bf16.msra.mxu0 %v1321
        %1356 = vmatprep.subr.bf16.mxu0 0
        %1357 = vmatpush2.bf16.msra.mxu0 %v1320
        %1358 = vmatprep.subr.bf16.mxu0 0
        %1359 = vmatpush2.bf16.msra.mxu0 %v1319
        %1360 = vmatprep.subr.bf16.mxu0 0
        %1361 = vmatpush2.bf16.msra.mxu0 %v1318
        %1362 = vmatprep.subr.bf16.mxu0 0
        %1363 = vmatpush2.bf16.msra.mxu0 %v1317
        %1364 = vmatprep.subr.bf16.mxu0 0
        %1365 = vmatpush2.bf16.msra.mxu0 %v1316
        %1366 = vmatprep.subr.bf16.mxu0 0
        %1367 = vmatpush2.bf16.msra.mxu0 %v1315
        %1368 = vmatprep.subr.bf16.mxu0 0
        %1369 = vmatpush2.bf16.msra.mxu0 %v1314
        %1370 = vmatprep.mubr.bf16.mxu0 %v1241
        %1371 = vmatmul.mubr.bf16.gmra.mxu0 %v1240
        %v1372 = vpop.f32.mrf.mxu0
        %v1373 = vadd.f32 0.0, %v1372
        %v1374 = vpop.f32.mrf.mxu0
        %v1375 = vpop.f32.mrf.mxu0
        %v1376 = vpop.f32.mrf.mxu0
        %1377 = vdwg.mxu0
        %v1378 = vstv %s1037
        %v1379 = vmul.f32 %v1378, %v1235
        %s1380 = ssub.f32 1.0, %s1037
        %v1381 = vstv %s1380
        %v1382 = vmul.f32 %v1381, %v1373
        %v1383 = vadd.f32 %v1379, %v1382
        %v1384 = vld [vmem:[%s14] sm:$0x1]
        %v1385 = vld [vmem:[%s506] sm:$0x1]
        %v1386 = vpack.c.bf16 %v1385, %v1385
        %v1387 = vld [vmem:[%s13] sm:$0xf]
        %vm1388 = vcmask 64512
        %v1390 = vsel %vm1388, %v1386, 0
        %v1393 = vsel %vm675, %v1387, 0
        %1395 = vmatprep.subr.bf16.mxu0 0
        %1396 = vmatpush1.bf16.msra.mxu0 0
        %1397 = vmatprep.subr.bf16.mxu0 0
        %1398 = vmatpush1.bf16.msra.mxu0 0
        %1399 = vmatprep.subr.bf16.mxu0 0
        %1400 = vmatpush1.bf16.msra.mxu0 0
        %1401 = vmatprep.subr.bf16.mxu0 0
        %1402 = vmatpush1.bf16.msra.mxu0 0
        %1403 = vmatprep.subr.bf16.mxu0 0
        %1404 = vmatpush1.bf16.msra.mxu0 0
        %1405 = vmatprep.subr.bf16.mxu0 0
        %1406 = vmatpush1.bf16.msra.mxu0 0
        %1407 = vmatprep.subr.bf16.mxu0 0
        %1408 = vmatpush1.bf16.msra.mxu0 0
        %1409 = vmatprep.subr.bf16.mxu0 0
        %1410 = vmatpush1.bf16.msra.mxu0 %v1393
        %1411 = vmatprep.subr.bf16.mxu0 0
        %1412 = vmatpush2.bf16.msra.mxu0 0
        %1413 = vmatprep.subr.bf16.mxu0 0
        %1414 = vmatpush2.bf16.msra.mxu0 0
        %1415 = vmatprep.subr.bf16.mxu0 0
        %1416 = vmatpush2.bf16.msra.mxu0 0
        %1417 = vmatprep.subr.bf16.mxu0 0
        %1418 = vmatpush2.bf16.msra.mxu0 0
        %1419 = vmatprep.subr.bf16.mxu0 0
        %1420 = vmatpush2.bf16.msra.mxu0 0
        %1421 = vmatprep.subr.bf16.mxu0 0
        %1422 = vmatpush2.bf16.msra.mxu0 0
        %1423 = vmatprep.subr.bf16.mxu0 0
        %1424 = vmatpush2.bf16.msra.mxu0 0
        %1425 = vmatprep.subr.bf16.mxu0 0
        %1426 = vmatpush2.bf16.msra.mxu0 0
        %1427 = vmatprep.mubr.bf16.mxu0 0
        %1428 = vmatmul.mubr.bf16.gmra.mxu0 %v1390
        %v1429 = vpop.f32.mrf.mxu0
        %v1430 = vadd.f32 0.0, %v1429
        %v1431 = vpop.f32.mrf.mxu0
        %v1432 = vpop.f32.mrf.mxu0
        %v1433 = vpop.f32.mrf.mxu0
        %1434 = vdwg.mxu0
        %v1435 = vadd.f32 %v1384, %v1430
        %v1436 = vpack.c.bf16 %v1383, %v1383
        %v1437 = vld [vmem:[%s12] sm:$0xf]
        %v1438 = vld [vmem:[%s12 + $0x4] sm:$0xf]
        %v1441 = vunpack.c.l.b16 %v1437
        %v1442 = vunpack.c.l.b16 %v1438
        %v1443 = vpack.c.b16 %v1442, %v1441
        %vm1445 = vcmask 130048
        %v1447 = vsel %vm1445, %v1436, 0
        %1449 = vmatprep.subr.bf16.mxu0 0
        %1450 = vmatpush1.bf16.msra.mxu0 0
        %1451 = vmatprep.subr.bf16.mxu0 0
        %1452 = vmatpush1.bf16.msra.mxu0 0
        %1453 = vmatprep.subr.bf16.mxu0 0
        %1454 = vmatpush1.bf16.msra.mxu0 0
        %1455 = vmatprep.subr.bf16.mxu0 0
        %1456 = vmatpush1.bf16.msra.mxu0 0
        %1457 = vmatprep.subr.bf16.mxu0 0
        %1458 = vmatpush1.bf16.msra.mxu0 0
        %1459 = vmatprep.subr.bf16.mxu0 0
        %1460 = vmatpush1.bf16.msra.mxu0 0
        %1461 = vmatprep.subr.bf16.mxu0 0
        %1462 = vmatpush1.bf16.msra.mxu0 0
        %1463 = vmatprep.subr.bf16.mxu0 0
        %1464 = vmatpush1.bf16.msra.mxu0 %v1443
        %1465 = vmatprep.subr.bf16.mxu0 0
        %1466 = vmatpush2.bf16.msra.mxu0 0
        %1467 = vmatprep.subr.bf16.mxu0 0
        %1468 = vmatpush2.bf16.msra.mxu0 0
        %1469 = vmatprep.subr.bf16.mxu0 0
        %1470 = vmatpush2.bf16.msra.mxu0 0
        %1471 = vmatprep.subr.bf16.mxu0 0
        %1472 = vmatpush2.bf16.msra.mxu0 0
        %1473 = vmatprep.subr.bf16.mxu0 0
        %1474 = vmatpush2.bf16.msra.mxu0 0
        %1475 = vmatprep.subr.bf16.mxu0 0
        %1476 = vmatpush2.bf16.msra.mxu0 0
        %1477 = vmatprep.subr.bf16.mxu0 0
        %1478 = vmatpush2.bf16.msra.mxu0 0
        %1479 = vmatprep.subr.bf16.mxu0 0
        %1480 = vmatpush2.bf16.msra.mxu0 0
        %1481 = vmatprep.mubr.bf16.mxu0 0
        %1482 = vmatmul.mubr.bf16.gmra.mxu0 %v1447
        %v1483 = vpop.f32.mrf.mxu0
        %v1484 = vadd.f32 0.0, %v1483
        %v1485 = vpop.f32.mrf.mxu0
        %v1486 = vpop.f32.mrf.mxu0
        %v1487 = vpop.f32.mrf.mxu0
        %1488 = vdwg.mxu0
        %v1489 = vadd.f32 %v1435, %v1484
        %s1490 = scalar_lea.vmem %s12, 8
        %v1491 = vld [vmem:[%s1490] sm:$0xf]
        %v1492 = vld [vmem:[%s1490 + $0x4] sm:$0xf]
        %v1493 = vshrl.u32 %v1436, 16
        %v1497 = vunpack.c.l.b16 %v1491
        %v1498 = vunpack.c.l.b16 %v1492
        %v1499 = vpack.c.b16 %v1498, %v1497
        %v1502 = vsel %vm1445, %v1493, 0
        %1504 = vmatprep.subr.bf16.mxu0 0
        %1505 = vmatpush1.bf16.msra.mxu0 0
        %1506 = vmatprep.subr.bf16.mxu0 0
        %1507 = vmatpush1.bf16.msra.mxu0 0
        %1508 = vmatprep.subr.bf16.mxu0 0
        %1509 = vmatpush1.bf16.msra.mxu0 0
        %1510 = vmatprep.subr.bf16.mxu0 0
        %1511 = vmatpush1.bf16.msra.mxu0 0
        %1512 = vmatprep.subr.bf16.mxu0 0
        %1513 = vmatpush1.bf16.msra.mxu0 0
        %1514 = vmatprep.subr.bf16.mxu0 0
        %1515 = vmatpush1.bf16.msra.mxu0 0
        %1516 = vmatprep.subr.bf16.mxu0 0
        %1517 = vmatpush1.bf16.msra.mxu0 0
        %1518 = vmatprep.subr.bf16.mxu0 0
        %1519 = vmatpush1.bf16.msra.mxu0 %v1499
        %1520 = vmatprep.subr.bf16.mxu0 0
        %1521 = vmatpush2.bf16.msra.mxu0 0
        %1522 = vmatprep.subr.bf16.mxu0 0
        %1523 = vmatpush2.bf16.msra.mxu0 0
        %1524 = vmatprep.subr.bf16.mxu0 0
        %1525 = vmatpush2.bf16.msra.mxu0 0
        %1526 = vmatprep.subr.bf16.mxu0 0
        %1527 = vmatpush2.bf16.msra.mxu0 0
        %1528 = vmatprep.subr.bf16.mxu0 0
        %1529 = vmatpush2.bf16.msra.mxu0 0
        %1530 = vmatprep.subr.bf16.mxu0 0
        %1531 = vmatpush2.bf16.msra.mxu0 0
        %1532 = vmatprep.subr.bf16.mxu0 0
        %1533 = vmatpush2.bf16.msra.mxu0 0
        %1534 = vmatprep.subr.bf16.mxu0 0
        %1535 = vmatpush2.bf16.msra.mxu0 0
        %1536 = vmatprep.mubr.bf16.mxu0 0
        %1537 = vmatmul.mubr.bf16.gmra.mxu0 %v1502
        %v1538 = vpop.f32.mrf.mxu0
        %v1539 = vadd.f32 0.0, %v1538
        %v1540 = vpop.f32.mrf.mxu0
        %v1541 = vpop.f32.mrf.mxu0
        %v1542 = vpop.f32.mrf.mxu0
        %1543 = vdwg.mxu0
        %v1544 = vadd.f32 %v1489, %v1539
        %vm1545 = vcmask 57344
        %1546 = vst.msk [vmem:[%s498] sm:$0x1] %vm1545, %v1544
        %s1547 = sand.u32 %s363, 1
        %s1548 = scalar_lea.sflag [#allocation4], %s1547
        %s1549 = sand.u32 %s363, 1
        %s1550 = scalar_lea.vmem [#allocation3], %s1549
        // Predicated region
        $region81: #{tpu_custom_call.1} parent=79 // pred_check
          %p1551 = pneg %p373
        $region82: #{tpu_custom_call.1} parent=79 // pred_check_branch
          %1553 = sbr.rel (%p1551) target = $region84
        $region83: #{tpu_custom_call.1} parent=79 // pred_region
          %s1555 = ssub.s32 16, 16
          %1556 = vsyncadd %s1548, %s1555
          %s1557 = smul.addr %s30, 16
          %s1558 = scalar_lea.hbm %s15, %s1557
          %s1560 = sshll.u32 %s1550, 4
          %s1561 = int_to_ptr.vmem [resolvable:$true] %s1560
          %1563 = dma.vmem_to_hbm [thread:$0]  %s1561, 16, %s1558, %s1548
        $region84: #{tpu_custom_call.1} parent=79 // pred_fallthru
          _
      $region80: #{tpu_custom_call.1} parent=5 // pred_fallthru
        _
      %p1564 = scmp.le.s32.totalorder 2, %s25
      // Predicated region
      $region85: #{tpu_custom_call.1} parent=5 // pred_check
        %p1565 = pneg %p1564
      $region86: #{tpu_custom_call.1} parent=5 // pred_check_branch
        %1567 = sbr.rel (%p1565) target = $region88
      $region87: #{tpu_custom_call.1} parent=5 // pred_region
        %s1568 = ssub.s32 %s25, 2
        // Predicated region
        $region89: #{tpu_custom_call.1} parent=87 // pred_check
          %p1569 = pneg %p379
        $region90: #{tpu_custom_call.1} parent=87 // pred_check_branch
          %1571 = sbr.rel (%p1569) target = $region92
        $region91: #{tpu_custom_call.1} parent=87 // pred_region
          %s1572 = sand.u32 %s364, 1
          %s1573 = scalar_lea.sflag [#allocation4], %s1572
          %s1574 = sand.u32 %s364, 1
          %s1575 = scalar_lea.vmem [#allocation3], %s1574
          %1576 = dma.done %s1573, 16
        $region92: #{tpu_custom_call.1} parent=87 // pred_fallthru
          _
      $region88: #{tpu_custom_call.1} parent=5 // pred_fallthru
        _
    $region6: #{tpu_custom_call.1} parent=1 // loop_footer
      %s29 = sadd.s32 1, %s25
    $region7: #{tpu_custom_call.1} parent=1 // loop_footer_branch
      %24 = sbr.rel target = $region3
    $region8: #{tpu_custom_call.1} parent=1 // loop_exit
      _
    %1577 = vsyncpa [#allocation4], 1
    %s1578 = scalar_lea.sflag [#allocation4], 1
    %1579 = vsyncpa %s1578, 1

</llo_original>
